<compile_context>
chip_gen: v5e
topology: v5e:2x2
jax: 0.10.0
libtpu: 0.0.40
codegen_flags: <defaults>
</compile_context>

<pallas_src>
import functools
import math

import jax
import jax.numpy as jnp
from jax.experimental import pallas as pl
from jax.experimental.pallas import tpu as pltpu


def _mhsa_kernel(x_ref, wqk_ref, bqk_ref, o_ref, q_scr, k_scr, *,
                 batch_tile, seq_len, q_tile, num_heads, head_dim, embed):
    # One grid step = (batch tile bi = program_id(0), query block qi = program_id(1)).
    #   x_ref:   (Bt, S, E)      input batch tile (constant across qi -> no re-DMA)
    #   wqk_ref: (E, 2E)         [Wq * 1/sqrt(hd) | Wk]   (constant, single-buffered)
    #   bqk_ref: (1, 2E)         [bq * 1/sqrt(hd) | bk]
    #   o_ref:   (Bt, H, Tq, S)  attention probabilities for this query block
    #   q_scr:   (Bt, S, E)      scaled-Q VMEM cache (written at qi == 0)
    #   k_scr:   (Bt, S, E)      K VMEM cache
    qi = pl.program_id(1)

    # ---- fused Q/K projection: once per batch tile, cached in VMEM scratch ----
    @pl.when(qi == 0)
    def _():
        x = x_ref[...].reshape(batch_tile * seq_len, embed)
        # One (Bt*S, E) x (E, 2E) MXU matmul, f32 accumulation.  The 1/sqrt(hd)
        # scale is already folded into the Wq / bq columns on the host side.
        qk = jnp.dot(x, wqk_ref[...], preferred_element_type=jnp.float32)
        qk = qk + bqk_ref[0]
        q_scr[...] = qk[:, :embed].reshape(batch_tile, seq_len, embed)
        k_scr[...] = qk[:, embed:].reshape(batch_tile, seq_len, embed)

    # ---- scores + row softmax for this query block ----
    if q_tile == seq_len:                       # single q block: static indexing
        q_blk = q_scr[...]                      # (Bt, S, E)
    else:                                       # q_tile is a multiple of 8 here
        q0 = pl.multiple_of(qi * q_tile, q_tile)
        q_blk = q_scr[:, pl.ds(q0, q_tile), :]  # (Bt, Tq, E), sublane-aligned
    k_all = k_scr[...]                          # (Bt, S,  E)

    # TODO(synk): lax.fori_loop over heads for num_heads >= 8 (bounds live ranges).
    for h in range(num_heads):                  # static unroll; H is small
        lo = h * head_dim
        qh = q_blk[:, :, lo:lo + head_dim]      # (Bt, Tq, hd), already scaled
        kh = k_all[:, :, lo:lo + head_dim]      # (Bt, S,  hd)
        # Batched over the batch tile, contracting head_dim directly: no kh.T
        # transpose is ever materialized.
        energy = jnp.einsum("bqd,bkd->bqk", qh, kh,
                            preferred_element_type=jnp.float32)   # (Bt, Tq, S)

        # Numerically stable softmax, strictly f32; reciprocal-and-multiply of the
        # tiny (Bt,Tq,1) denominator instead of a full-tensor divide.  approx=False
        # keeps exact f32 parity with the reference.
        m = jnp.max(energy, axis=-1, keepdims=True)
        p = jnp.exp(energy - m)
        denom = jnp.sum(p, axis=-1, keepdims=True)
        inv = pl.reciprocal(denom, approx=False)
        # Direct per-head store into the output block (no concat copy): the HBM
        # writeback of o_ref is one block DMA per grid step regardless.
        o_ref[:, h, :, :] = (p * inv).astype(o_ref.dtype)


def _vmem_capacity_bytes():
    """Physical VMEM of the current TPU generation (fallback: 64 MiB, v7x-safe)."""
    try:
        cap = getattr(pltpu.get_tpu_info(), "vmem_capacity_bytes", None)
        if cap:
            return int(cap)
    except Exception:
        pass
    return 64 * 1024 * 1024


def _working_set_bytes(bt, tq, seq_len, embed, num_heads):
    """Per-step VMEM working set (f32)."""
    f = 4
    x_blk = bt * seq_len * embed * f              # input block
    w_blk = embed * 2 * embed * f                 # [Wq|Wk] (single-buffered)
    b_blk = 2 * embed * f
    scr = 2 * bt * seq_len * embed * f            # Q + K scratch caches (persistent)
    out_blk = bt * num_heads * tq * seq_len * f   # output block
    score = bt * tq * seq_len * f                 # one (Bt,Tq,S) f32 score tile
    # x / output blocks are double-buffered by the pipeline; ~3 score tiles of
    # intermediates (energy, exp, store staging) live inside the head loop.
    return 2 * x_blk + w_blk + b_blk + scr + 2 * out_blk + 3 * score


def _choose_tiles(batch, seq_len, embed, num_heads, vmem_cap):
    """Pick (batch_tile, q_tile).

    Priorities:
      * working set <= ~60% of physical VMEM (generation-aware),
      * >= 2 batch tiles when batch >= 2 (v7x megacore + writeback overlap),
      * per-step output block <= ~4 MiB so the pipeline gets >= 4-8 steps,
      * otherwise the largest tiles (fewest steps / least per-step overhead).
    """
    budget = int(vmem_cap * 0.6)
    out_target = 4 * 1024 * 1024

    def divisors_desc(n):
        return [d for d in range(n, 0, -1) if n % d == 0]

    # q tiles must divide S (so in-kernel pl.ds slices stay in-bounds) and keep the
    # output block's second-to-last dim a multiple of 8 (or the full sequence).
    tq_cands = [d for d in divisors_desc(seq_len) if d % 8 == 0 or d == seq_len]
    tq_min = tq_cands[-1]

    bt = 1
    for cand in divisors_desc(batch):
        if batch >= 2 and batch // cand < 2:
            continue                              # keep both v7x TensorCores busy
        if _working_set_bytes(cand, tq_min, seq_len, embed, num_heads) <= budget:
            bt = cand
            break

    tq = tq_min
    for cand in tq_cands:
        if _working_set_bytes(bt, cand, seq_len, embed, num_heads) > budget:
            continue
        if bt * num_heads * cand * seq_len * 4 <= out_target or cand == tq_min:
            tq = cand
            break
    return bt, tq


def multihead_self_attention(x, wq, bq, wk, bk, num_heads):
    """softmax(Q K^T / sqrt(head_dim)) with Q = x@wq+bq, K = x@wk+bk.  -> (B,H,S,S)."""
    B, S, E = x.shape
    H = num_heads
    hd = E // H

    vmem_cap = _vmem_capacity_bytes()
    Bt, Tq = _choose_tiles(B, S, E, H, vmem_cap)
    n_b, n_q = B // Bt, S // Tq

    # Fold the 1/sqrt(head_dim) scale into Wq / bq once on the host side: it then
    # rides along the projection matmul for free (no per-step VALU multiply).
    inv_scale = 1.0 / math.sqrt(float(hd))
    wqk = jnp.concatenate([wq * inv_scale, wk], axis=1)      # (E, 2E)
    bqk = jnp.concatenate([bq * inv_scale, bk], axis=1)      # (1, 2E)

    kernel = functools.partial(
        _mhsa_kernel, batch_tile=Bt, seq_len=S, q_tile=Tq,
        num_heads=H, head_dim=hd, embed=E)

    def build_call(single_buffer_weights):
        const_kwargs = (dict(pipeline_mode=pl.Buffered(1))
                        if single_buffer_weights else {})
        in_specs = [
            # x: re-DMA'd only when the batch tile changes (constant across qi).
            pl.BlockSpec((Bt, S, E), lambda bi, qi: (bi, 0, 0)),
            # Weights / bias: constant index map (never re-DMA'd) and single-
            # buffered so a dead second copy never occupies VMEM.
            pl.BlockSpec((E, 2 * E), lambda bi, qi: (0, 0), **const_kwargs),
            pl.BlockSpec((1, 2 * E), lambda bi, qi: (0, 0), **const_kwargs),
        ]
        out_spec = pl.BlockSpec((Bt, H, Tq, S), lambda bi, qi: (bi, 0, qi, 0))
        return pl.pallas_call(
            kernel,
            out_shape=jax.ShapeDtypeStruct((B, H, S, S), jnp.float32),
            grid=(n_b, n_q),
            in_specs=in_specs,
            out_specs=out_spec,
            scratch_shapes=[
                pltpu.VMEM((Bt, S, E), jnp.float32),   # scaled-Q cache
                pltpu.VMEM((Bt, S, E), jnp.float32),   # K cache
            ],
            compiler_params=pltpu.CompilerParams(
                # batch tiles are independent (megacore-splittable); q blocks are
                # sequential within a batch tile because they reuse the Q/K caches
                # computed at qi == 0.
                dimension_semantics=("parallel", "arbitrary"),
                vmem_limit_bytes=int(vmem_cap * 0.8),
            ),
        )

    try:
        return build_call(single_buffer_weights=True)(x, wqk, bqk)
    except Exception:
        # Fallback for Pallas builds that reject pipeline_mode=pl.Buffered(1).
        return build_call(single_buffer_weights=False)(x, wqk, bqk)


def _reference(x, wq, bq, wk, bk, num_heads):
    B, S, E = x.shape
    hd = E // num_heads
    q = (x @ wq + bq[0]).reshape(B, S, num_heads, hd).transpose(0, 2, 1, 3)
    k = (x @ wk + bk[0]).reshape(B, S, num_heads, hd).transpose(0, 2, 1, 3)
    energy = jnp.einsum("bhqd,bhkd->bhqk", q, k) / jnp.sqrt(jnp.float32(hd))
    return jax.nn.softmax(energy, axis=-1)


if __name__ == "__main__":
    # Small shapes consistent with the module: batch=2, seq=8, embed_size=32, heads=4
    B, S, E, H = 2, 8, 32, 4

    key = jax.random.PRNGKey(0)
    kx, kwq, kbq, kwk, kbk = jax.random.split(key, 5)

    # Deterministic synthetic parameters (Linear weights stored as (in, out)).
    scale = 1.0 / math.sqrt(E)
    x = jax.random.normal(kx, (B, S, E), dtype=jnp.float32)
    wq = jax.random.uniform(kwq, (E, E), jnp.float32, -scale, scale)
    bq = jax.random.uniform(kbq, (1, E), jnp.float32, -scale, scale)
    wk = jax.random.uniform(kwk, (E, E), jnp.float32, -scale, scale)
    bk = jax.random.uniform(kbk, (1, E), jnp.float32, -scale, scale)

    out = multihead_self_attention(x, wq, bq, wk, bk, H)
    out = jax.block_until_ready(out)

    ref = _reference(x, wq, bq, wk, bk, H)
    assert out.shape == (B, H, S, S)
    assert jnp.allclose(out, ref, atol=1e-5, rtol=1e-5)

    print("KERNEL_OK")
</pallas_src>

<mosaic_0001>
module attributes {stable_mosaic.version = 11 : i64} {
  func.func @_mhsa_kernel(%arg0: i32, %arg1: i32, %arg2: memref<1x8x32xf32, #tpu.memory_space<vmem>>, %arg3: memref<32x64xf32, #tpu.memory_space<vmem>>, %arg4: memref<1x64xf32, #tpu.memory_space<vmem>>, %arg5: memref<1x4x8x8xf32, #tpu.memory_space<vmem>>, %arg6: memref<1x8x32xf32, #tpu.memory_space<vmem>>, %arg7: memref<1x8x32xf32, #tpu.memory_space<vmem>>) attributes {dimension_semantics = [#tpu.dimension_semantics<parallel>, #tpu.dimension_semantics<arbitrary>], iteration_bounds = array<i64: 2, 1>, scalar_prefetch = 0 : i64, scratch_operands = 2 : i64, tpu.core_type = #tpu.core_type<tc>, window_params = [{transform_indices = @transform_0, window_bounds = array<i64: 1, 8, 32>}, {pipeline_mode = #tpu.pipeline_mode<synchronous>, transform_indices = @transform_1, window_bounds = array<i64: 32, 64>}, {pipeline_mode = #tpu.pipeline_mode<synchronous>, transform_indices = @transform_2, window_bounds = array<i64: 1, 64>}, {transform_indices = @transform_3, window_bounds = array<i64: 1, 4, 8, 8>}]} {
    %c0_i32 = arith.constant 0 : i32
    %0 = arith.cmpi eq, %arg1, %c0_i32 : i32
    %1 = arith.extui %0 : i1 to i32
    %c0_i32_0 = arith.constant 0 : i32
    %2 = arith.cmpi ne, %1, %c0_i32_0 : i32
    scf.if %2 {
      %c0_30 = arith.constant 0 : index
      %c0_31 = arith.constant 0 : index
      %c0_32 = arith.constant 0 : index
      %69 = vector.load %arg2[%c0_30, %c0_31, %c0_32] : memref<1x8x32xf32, #tpu.memory_space<vmem>>, vector<1x8x32xf32>
      %70 = vector.shape_cast %69 : vector<1x8x32xf32> to vector<8x32xf32>
      %c0_33 = arith.constant 0 : index
      %c0_34 = arith.constant 0 : index
      %71 = vector.load %arg3[%c0_33, %c0_34] : memref<32x64xf32, #tpu.memory_space<vmem>>, vector<32x64xf32>
      %cst_35 = arith.constant dense<0.000000e+00> : vector<8x64xf32>
      %72 = tpu.matmul %70, %71, %cst_35 {dimension_numbers = #tpu.dot_dimension_numbers<[1], [0], [0], [1], [0, 0, 1, 1], [], []>} : vector<8x32xf32>, vector<32x64xf32>, vector<8x64xf32> -> vector<8x64xf32>
      %c0_36 = arith.constant 0 : index
      %c0_37 = arith.constant 0 : index
      %73 = vector.load %arg4[%c0_36, %c0_37] : memref<1x64xf32, #tpu.memory_space<vmem>>, vector<1x64xf32>
      %74 = vector.shape_cast %73 : vector<1x64xf32> to vector<64xf32>
      %75 = vector.shape_cast %74 : vector<64xf32> to vector<1x64xf32>
      %76 = vector.broadcast %75 : vector<1x64xf32> to vector<8x64xf32>
      %77 = arith.addf %72, %76 : vector<8x64xf32>
      %78 = vector.extract_strided_slice %77 {offsets = [0, 0], sizes = [8, 32], strides = [1, 1]} : vector<8x64xf32> to vector<8x32xf32>
      %79 = vector.shape_cast %78 : vector<8x32xf32> to vector<1x8x32xf32>
      %c0_38 = arith.constant 0 : index
      %c0_39 = arith.constant 0 : index
      %c0_40 = arith.constant 0 : index
      %80 = vector.load %arg6[%c0_38, %c0_39, %c0_40] : memref<1x8x32xf32, #tpu.memory_space<vmem>>, vector<1x8x32xf32>
      tpu.vector_store %arg6[%c0_38, %c0_39, %c0_40], %79 {strides = array<i32>} : memref<1x8x32xf32, #tpu.memory_space<vmem>>, vector<1x8x32xf32>,
      %81 = vector.extract_strided_slice %77 {offsets = [0, 32], sizes = [8, 32], strides = [1, 1]} : vector<8x64xf32> to vector<8x32xf32>
      %82 = vector.shape_cast %81 : vector<8x32xf32> to vector<1x8x32xf32>
      %c0_41 = arith.constant 0 : index
      %c0_42 = arith.constant 0 : index
      %c0_43 = arith.constant 0 : index
      %83 = vector.load %arg7[%c0_41, %c0_42, %c0_43] : memref<1x8x32xf32, #tpu.memory_space<vmem>>, vector<1x8x32xf32>
      tpu.vector_store %arg7[%c0_41, %c0_42, %c0_43], %82 {strides = array<i32>} : memref<1x8x32xf32, #tpu.memory_space<vmem>>, vector<1x8x32xf32>,
    } else {
    }
    %c0 = arith.constant 0 : index
    %c0_1 = arith.constant 0 : index
    %c0_2 = arith.constant 0 : index
    %3 = vector.load %arg6[%c0, %c0_1, %c0_2] : memref<1x8x32xf32, #tpu.memory_space<vmem>>, vector<1x8x32xf32>
    %c0_3 = arith.constant 0 : index
    %c0_4 = arith.constant 0 : index
    %c0_5 = arith.constant 0 : index
    %4 = vector.load %arg7[%c0_3, %c0_4, %c0_5] : memref<1x8x32xf32, #tpu.memory_space<vmem>>, vector<1x8x32xf32>
    %5 = vector.extract_strided_slice %3 {offsets = [0, 0, 0], sizes = [1, 8, 8], strides = [1, 1, 1]} : vector<1x8x32xf32> to vector<1x8x8xf32>
    %6 = vector.extract_strided_slice %4 {offsets = [0, 0, 0], sizes = [1, 8, 8], strides = [1, 1, 1]} : vector<1x8x32xf32> to vector<1x8x8xf32>
    "tpu.trace_start"() <{level = 10 : i32, message = "bqd,bkd->bqk"}> : () -> ()
    %cst = arith.constant dense<0.000000e+00> : vector<1x8x8xf32>
    %7 = tpu.matmul %5, %6, %cst {dimension_numbers = #tpu.dot_dimension_numbers<[2], [2], [1], [1], [0, 0, 0, 1, 1, 1], [0], [0]>} : vector<1x8x8xf32>, vector<1x8x8xf32>, vector<1x8x8xf32> -> vector<1x8x8xf32>
    "tpu.trace_stop"() : () -> ()
    %cst_6 = arith.constant dense<0xFF800000> : vector<1x8xf32>
    %8 = vector.multi_reduction <maximumf>, %7, %cst_6 [2] : vector<1x8x8xf32> to vector<1x8xf32>
    %9 = vector.shape_cast %8 : vector<1x8xf32> to vector<1x8x1xf32>
    %10 = vector.broadcast %9 : vector<1x8x1xf32> to vector<1x8x8xf32>
    %11 = arith.subf %7, %10 : vector<1x8x8xf32>
    %12 = math.exp %11 : vector<1x8x8xf32>
    %cst_7 = arith.constant dense<0.000000e+00> : vector<1x8xf32>
    %13 = vector.multi_reduction <add>, %12, %cst_7 [2] : vector<1x8x8xf32> to vector<1x8xf32>
    %14 = vector.shape_cast %13 : vector<1x8xf32> to vector<1x8x1xf32>
    %15 = tpu.reciprocal %14 : vector<1x8x1xf32> -> vector<1x8x1xf32>
    %16 = vector.broadcast %15 : vector<1x8x1xf32> to vector<1x8x8xf32>
    %17 = arith.mulf %12, %16 : vector<1x8x8xf32>
    %c0_8 = arith.constant 0 : index
    %c0_9 = arith.constant 0 : index
    %c0_10 = arith.constant 0 : index
    %c0_11 = arith.constant 0 : index
    %18 = vector.load %arg5[%c0_8, %c0_9, %c0_10, %c0_11] : memref<1x4x8x8xf32, #tpu.memory_space<vmem>>, vector<1x1x8x8xf32>
    %19 = vector.shape_cast %18 : vector<1x1x8x8xf32> to vector<1x8x8xf32>
    %20 = vector.shape_cast %17 : vector<1x8x8xf32> to vector<1x1x8x8xf32>
    tpu.vector_store %arg5[%c0_8, %c0_9, %c0_10, %c0_11], %20 {strides = array<i32>} : memref<1x4x8x8xf32, #tpu.memory_space<vmem>>, vector<1x1x8x8xf32>,
    %21 = vector.extract_strided_slice %3 {offsets = [0, 0, 8], sizes = [1, 8, 8], strides = [1, 1, 1]} : vector<1x8x32xf32> to vector<1x8x8xf32>
    %22 = vector.extract_strided_slice %4 {offsets = [0, 0, 8], sizes = [1, 8, 8], strides = [1, 1, 1]} : vector<1x8x32xf32> to vector<1x8x8xf32>
    "tpu.trace_start"() <{level = 10 : i32, message = "bqd,bkd->bqk"}> : () -> ()
    %cst_12 = arith.constant dense<0.000000e+00> : vector<1x8x8xf32>
    %23 = tpu.matmul %21, %22, %cst_12 {dimension_numbers = #tpu.dot_dimension_numbers<[2], [2], [1], [1], [0, 0, 0, 1, 1, 1], [0], [0]>} : vector<1x8x8xf32>, vector<1x8x8xf32>, vector<1x8x8xf32> -> vector<1x8x8xf32>
    "tpu.trace_stop"() : () -> ()
    %cst_13 = arith.constant dense<0xFF800000> : vector<1x8xf32>
    %24 = vector.multi_reduction <maximumf>, %23, %cst_13 [2] : vector<1x8x8xf32> to vector<1x8xf32>
    %25 = vector.shape_cast %24 : vector<1x8xf32> to vector<1x8x1xf32>
    %26 = vector.broadcast %25 : vector<1x8x1xf32> to vector<1x8x8xf32>
    %27 = arith.subf %23, %26 : vector<1x8x8xf32>
    %28 = math.exp %27 : vector<1x8x8xf32>
    %cst_14 = arith.constant dense<0.000000e+00> : vector<1x8xf32>
    %29 = vector.multi_reduction <add>, %28, %cst_14 [2] : vector<1x8x8xf32> to vector<1x8xf32>
    %30 = vector.shape_cast %29 : vector<1x8xf32> to vector<1x8x1xf32>
    %31 = tpu.reciprocal %30 : vector<1x8x1xf32> -> vector<1x8x1xf32>
    %32 = vector.broadcast %31 : vector<1x8x1xf32> to vector<1x8x8xf32>
    %33 = arith.mulf %28, %32 : vector<1x8x8xf32>
    %c0_15 = arith.constant 0 : index
    %c1 = arith.constant 1 : index
    %c0_16 = arith.constant 0 : index
    %c0_17 = arith.constant 0 : index
    %34 = vector.load %arg5[%c0_15, %c1, %c0_16, %c0_17] : memref<1x4x8x8xf32, #tpu.memory_space<vmem>>, vector<1x1x8x8xf32>
    %35 = vector.shape_cast %34 : vector<1x1x8x8xf32> to vector<1x8x8xf32>
    %36 = vector.shape_cast %33 : vector<1x8x8xf32> to vector<1x1x8x8xf32>
    tpu.vector_store %arg5[%c0_15, %c1, %c0_16, %c0_17], %36 {strides = array<i32>} : memref<1x4x8x8xf32, #tpu.memory_space<vmem>>, vector<1x1x8x8xf32>,
    %37 = vector.extract_strided_slice %3 {offsets = [0, 0, 16], sizes = [1, 8, 8], strides = [1, 1, 1]} : vector<1x8x32xf32> to vector<1x8x8xf32>
    %38 = vector.extract_strided_slice %4 {offsets = [0, 0, 16], sizes = [1, 8, 8], strides = [1, 1, 1]} : vector<1x8x32xf32> to vector<1x8x8xf32>
    "tpu.trace_start"() <{level = 10 : i32, message = "bqd,bkd->bqk"}> : () -> ()
    %cst_18 = arith.constant dense<0.000000e+00> : vector<1x8x8xf32>
    %39 = tpu.matmul %37, %38, %cst_18 {dimension_numbers = #tpu.dot_dimension_numbers<[2], [2], [1], [1], [0, 0, 0, 1, 1, 1], [0], [0]>} : vector<1x8x8xf32>, vector<1x8x8xf32>, vector<1x8x8xf32> -> vector<1x8x8xf32>
    "tpu.trace_stop"() : () -> ()
    %cst_19 = arith.constant dense<0xFF800000> : vector<1x8xf32>
    %40 = vector.multi_reduction <maximumf>, %39, %cst_19 [2] : vector<1x8x8xf32> to vector<1x8xf32>
    %41 = vector.shape_cast %40 : vector<1x8xf32> to vector<1x8x1xf32>
    %42 = vector.broadcast %41 : vector<1x8x1xf32> to vector<1x8x8xf32>
    %43 = arith.subf %39, %42 : vector<1x8x8xf32>
    %44 = math.exp %43 : vector<1x8x8xf32>
    %cst_20 = arith.constant dense<0.000000e+00> : vector<1x8xf32>
    %45 = vector.multi_reduction <add>, %44, %cst_20 [2] : vector<1x8x8xf32> to vector<1x8xf32>
    %46 = vector.shape_cast %45 : vector<1x8xf32> to vector<1x8x1xf32>
    %47 = tpu.reciprocal %46 : vector<1x8x1xf32> -> vector<1x8x1xf32>
    %48 = vector.broadcast %47 : vector<1x8x1xf32> to vector<1x8x8xf32>
    %49 = arith.mulf %44, %48 : vector<1x8x8xf32>
    %c0_21 = arith.constant 0 : index
    %c2 = arith.constant 2 : index
    %c0_22 = arith.constant 0 : index
    %c0_23 = arith.constant 0 : index
    %50 = vector.load %arg5[%c0_21, %c2, %c0_22, %c0_23] : memref<1x4x8x8xf32, #tpu.memory_space<vmem>>, vector<1x1x8x8xf32>
    %51 = vector.shape_cast %50 : vector<1x1x8x8xf32> to vector<1x8x8xf32>
    %52 = vector.shape_cast %49 : vector<1x8x8xf32> to vector<1x1x8x8xf32>
    tpu.vector_store %arg5[%c0_21, %c2, %c0_22, %c0_23], %52 {strides = array<i32>} : memref<1x4x8x8xf32, #tpu.memory_space<vmem>>, vector<1x1x8x8xf32>,
    %53 = vector.extract_strided_slice %3 {offsets = [0, 0, 24], sizes = [1, 8, 8], strides = [1, 1, 1]} : vector<1x8x32xf32> to vector<1x8x8xf32>
    %54 = vector.extract_strided_slice %4 {offsets = [0, 0, 24], sizes = [1, 8, 8], strides = [1, 1, 1]} : vector<1x8x32xf32> to vector<1x8x8xf32>
    "tpu.trace_start"() <{level = 10 : i32, message = "bqd,bkd->bqk"}> : () -> ()
    %cst_24 = arith.constant dense<0.000000e+00> : vector<1x8x8xf32>
    %55 = tpu.matmul %53, %54, %cst_24 {dimension_numbers = #tpu.dot_dimension_numbers<[2], [2], [1], [1], [0, 0, 0, 1, 1, 1], [0], [0]>} : vector<1x8x8xf32>, vector<1x8x8xf32>, vector<1x8x8xf32> -> vector<1x8x8xf32>
    "tpu.trace_stop"() : () -> ()
    %cst_25 = arith.constant dense<0xFF800000> : vector<1x8xf32>
    %56 = vector.multi_reduction <maximumf>, %55, %cst_25 [2] : vector<1x8x8xf32> to vector<1x8xf32>
    %57 = vector.shape_cast %56 : vector<1x8xf32> to vector<1x8x1xf32>
    %58 = vector.broadcast %57 : vector<1x8x1xf32> to vector<1x8x8xf32>
    %59 = arith.subf %55, %58 : vector<1x8x8xf32>
    %60 = math.exp %59 : vector<1x8x8xf32>
    %cst_26 = arith.constant dense<0.000000e+00> : vector<1x8xf32>
    %61 = vector.multi_reduction <add>, %60, %cst_26 [2] : vector<1x8x8xf32> to vector<1x8xf32>
    %62 = vector.shape_cast %61 : vector<1x8xf32> to vector<1x8x1xf32>
    %63 = tpu.reciprocal %62 : vector<1x8x1xf32> -> vector<1x8x1xf32>
    %64 = vector.broadcast %63 : vector<1x8x1xf32> to vector<1x8x8xf32>
    %65 = arith.mulf %60, %64 : vector<1x8x8xf32>
    %c0_27 = arith.constant 0 : index
    %c3 = arith.constant 3 : index
    %c0_28 = arith.constant 0 : index
    %c0_29 = arith.constant 0 : index
    %66 = vector.load %arg5[%c0_27, %c3, %c0_28, %c0_29] : memref<1x4x8x8xf32, #tpu.memory_space<vmem>>, vector<1x1x8x8xf32>
    %67 = vector.shape_cast %66 : vector<1x1x8x8xf32> to vector<1x8x8xf32>
    %68 = vector.shape_cast %65 : vector<1x8x8xf32> to vector<1x1x8x8xf32>
    tpu.vector_store %arg5[%c0_27, %c3, %c0_28, %c0_29], %68 {strides = array<i32>} : memref<1x4x8x8xf32, #tpu.memory_space<vmem>>, vector<1x1x8x8xf32>,
    return
  }
  func.func @transform_0(%arg0: i32, %arg1: i32) -> (i32, i32, i32) {
    %c0_i32 = arith.constant 0 : i32
    %c0_i32_0 = arith.constant 0 : i32
    %c0_i32_1 = arith.constant 0 : i32
    return %arg0, %c0_i32, %c0_i32_0 : i32, i32, i32
  }
  func.func @transform_1(%arg0: i32, %arg1: i32) -> (i32, i32) {
    %c0_i32 = arith.constant 0 : i32
    %c0_i32_0 = arith.constant 0 : i32
    %c0_i32_1 = arith.constant 0 : i32
    return %c0_i32, %c0_i32_0 : i32, i32
  }
  func.func @transform_2(%arg0: i32, %arg1: i32) -> (i32, i32) {
    %c0_i32 = arith.constant 0 : i32
    %c0_i32_0 = arith.constant 0 : i32
    %c0_i32_1 = arith.constant 0 : i32
    return %c0_i32, %c0_i32_0 : i32, i32
  }
  func.func @transform_3(%arg0: i32, %arg1: i32) -> (i32, i32, i32, i32) {
    %c0_i32 = arith.constant 0 : i32
    %c0_i32_0 = arith.constant 0 : i32
    %c0_i32_1 = arith.constant 0 : i32
    return %arg0, %c0_i32, %arg1, %c0_i32_0 : i32, i32, i32, i32
  }
}

module attributes {stable_mosaic.version = 11 : i64} {
  func.func @_mhsa_kernel(%arg0: i32, %arg1: i32, %arg2: memref<1x8x32xf32, #tpu.memory_space<vmem>>, %arg3: memref<32x64xf32, #tpu.memory_space<vmem>>, %arg4: memref<1x64xf32, #tpu.memory_space<vmem>>, %arg5: memref<1x4x8x8xf32, #tpu.memory_space<vmem>>, %arg6: memref<1x8x32xf32, #tpu.memory_space<vmem>>, %arg7: memref<1x8x32xf32, #tpu.memory_space<vmem>>) attributes {dimension_semantics = [#tpu.dimension_semantics<parallel>, #tpu.dimension_semantics<arbitrary>], iteration_bounds = array<i64: 2, 1>, scalar_prefetch = 0 : i64, scratch_operands = 2 : i64, tpu.core_type = #tpu.core_type<tc>, window_params = [{transform_indices = @transform_0, window_bounds = array<i64: 1, 8, 32>}, {pipeline_mode = #tpu.pipeline_mode<synchronous>, transform_indices = @transform_1, window_bounds = array<i64: 32, 64>}, {pipeline_mode = #tpu.pipeline_mode<synchronous>, transform_indices = @transform_2, window_bounds = array<i64: 1, 64>}, {transform_indices = @transform_3, window_bounds = array<i64: 1, 4, 8, 8>}]} {
    %c0_i32 = arith.constant 0 : i32
    %0 = arith.cmpi eq, %arg1, %c0_i32 : i32
    %1 = arith.extui %0 : i1 to i32
    %c0_i32_0 = arith.constant 0 : i32
    %2 = arith.cmpi ne, %1, %c0_i32_0 : i32
    scf.if %2 {
      %c0_30 = arith.constant 0 : index
      %c0_31 = arith.constant 0 : index
      %c0_32 = arith.constant 0 : index
      %69 = vector.load %arg2[%c0_30, %c0_31, %c0_32] : memref<1x8x32xf32, #tpu.memory_space<vmem>>, vector<1x8x32xf32>
      %70 = vector.shape_cast %69 : vector<1x8x32xf32> to vector<8x32xf32>
      %c0_33 = arith.constant 0 : index
      %c0_34 = arith.constant 0 : index
      %71 = vector.load %arg3[%c0_33, %c0_34] : memref<32x64xf32, #tpu.memory_space<vmem>>, vector<32x64xf32>
      %cst_35 = arith.constant dense<0.000000e+00> : vector<8x64xf32>
      %72 = tpu.matmul %70, %71, %cst_35 {dimension_numbers = #tpu.dot_dimension_numbers<[1], [0], [0], [1], [0, 0, 1, 1], [], []>} : vector<8x32xf32>, vector<32x64xf32>, vector<8x64xf32> -> vector<8x64xf32>
      %c0_36 = arith.constant 0 : index
      %c0_37 = arith.constant 0 : index
      %73 = vector.load %arg4[%c0_36, %c0_37] : memref<1x64xf32, #tpu.memory_space<vmem>>, vector<1x64xf32>
      %74 = vector.shape_cast %73 : vector<1x64xf32> to vector<64xf32>
      %75 = vector.shape_cast %74 : vector<64xf32> to vector<1x64xf32>
      %76 = vector.broadcast %75 : vector<1x64xf32> to vector<8x64xf32>
      %77 = arith.addf %72, %76 : vector<8x64xf32>
      %78 = vector.extract_strided_slice %77 {offsets = [0, 0], sizes = [8, 32], strides = [1, 1]} : vector<8x64xf32> to vector<8x32xf32>
      %79 = vector.shape_cast %78 : vector<8x32xf32> to vector<1x8x32xf32>
      %c0_38 = arith.constant 0 : index
      %c0_39 = arith.constant 0 : index
      %c0_40 = arith.constant 0 : index
      %80 = vector.load %arg6[%c0_38, %c0_39, %c0_40] : memref<1x8x32xf32, #tpu.memory_space<vmem>>, vector<1x8x32xf32>
      tpu.vector_store %arg6[%c0_38, %c0_39, %c0_40], %79 {strides = array<i32>} : memref<1x8x32xf32, #tpu.memory_space<vmem>>, vector<1x8x32xf32>,
      %81 = vector.extract_strided_slice %77 {offsets = [0, 32], sizes = [8, 32], strides = [1, 1]} : vector<8x64xf32> to vector<8x32xf32>
      %82 = vector.shape_cast %81 : vector<8x32xf32> to vector<1x8x32xf32>
      %c0_41 = arith.constant 0 : index
      %c0_42 = arith.constant 0 : index
      %c0_43 = arith.constant 0 : index
      %83 = vector.load %arg7[%c0_41, %c0_42, %c0_43] : memref<1x8x32xf32, #tpu.memory_space<vmem>>, vector<1x8x32xf32>
      tpu.vector_store %arg7[%c0_41, %c0_42, %c0_43], %82 {strides = array<i32>} : memref<1x8x32xf32, #tpu.memory_space<vmem>>, vector<1x8x32xf32>,
    } else {
    }
    %c0 = arith.constant 0 : index
    %c0_1 = arith.constant 0 : index
    %c0_2 = arith.constant 0 : index
    %3 = vector.load %arg6[%c0, %c0_1, %c0_2] : memref<1x8x32xf32, #tpu.memory_space<vmem>>, vector<1x8x32xf32>
    %c0_3 = arith.constant 0 : index
    %c0_4 = arith.constant 0 : index
    %c0_5 = arith.constant 0 : index
    %4 = vector.load %arg7[%c0_3, %c0_4, %c0_5] : memref<1x8x32xf32, #tpu.memory_space<vmem>>, vector<1x8x32xf32>
    %5 = vector.extract_strided_slice %3 {offsets = [0, 0, 0], sizes = [1, 8, 8], strides = [1, 1, 1]} : vector<1x8x32xf32> to vector<1x8x8xf32>
    %6 = vector.extract_strided_slice %4 {offsets = [0, 0, 0], sizes = [1, 8, 8], strides = [1, 1, 1]} : vector<1x8x32xf32> to vector<1x8x8xf32>
    "tpu.trace_start"() <{level = 10 : i32, message = "bqd,bkd->bqk"}> : () -> ()
    %cst = arith.constant dense<0.000000e+00> : vector<1x8x8xf32>
    %7 = tpu.matmul %5, %6, %cst {dimension_numbers = #tpu.dot_dimension_numbers<[2], [2], [1], [1], [0, 0, 0, 1, 1, 1], [0], [0]>} : vector<1x8x8xf32>, vector<1x8x8xf32>, vector<1x8x8xf32> -> vector<1x8x8xf32>
    "tpu.trace_stop"() : () -> ()
    %cst_6 = arith.constant dense<0xFF800000> : vector<1x8xf32>
    %8 = vector.multi_reduction <maximumf>, %7, %cst_6 [2] : vector<1x8x8xf32> to vector<1x8xf32>
    %9 = vector.shape_cast %8 : vector<1x8xf32> to vector<1x8x1xf32>
    %10 = vector.broadcast %9 : vector<1x8x1xf32> to vector<1x8x8xf32>
    %11 = arith.subf %7, %10 : vector<1x8x8xf32>
    %12 = math.exp %11 : vector<1x8x8xf32>
    %cst_7 = arith.constant dense<0.000000e+00> : vector<1x8xf32>
    %13 = vector.multi_reduction <add>, %12, %cst_7 [2] : vector<1x8x8xf32> to vector<1x8xf32>
    %14 = vector.shape_cast %13 : vector<1x8xf32> to vector<1x8x1xf32>
    %15 = tpu.reciprocal %14 : vector<1x8x1xf32> -> vector<1x8x1xf32>
    %16 = vector.broadcast %15 : vector<1x8x1xf32> to vector<1x8x8xf32>
    %17 = arith.mulf %12, %16 : vector<1x8x8xf32>
    %c0_8 = arith.constant 0 : index
    %c0_9 = arith.constant 0 : index
    %c0_10 = arith.constant 0 : index
    %c0_11 = arith.constant 0 : index
    %18 = vector.load %arg5[%c0_8, %c0_9, %c0_10, %c0_11] : memref<1x4x8x8xf32, #tpu.memory_space<vmem>>, vector<1x1x8x8xf32>
    %19 = vector.shape_cast %18 : vector<1x1x8x8xf32> to vector<1x8x8xf32>
    %20 = vector.shape_cast %17 : vector<1x8x8xf32> to vector<1x1x8x8xf32>
    tpu.vector_store %arg5[%c0_8, %c0_9, %c0_10, %c0_11], %20 {strides = array<i32>} : memref<1x4x8x8xf32, #tpu.memory_space<vmem>>, vector<1x1x8x8xf32>,
    %21 = vector.extract_strided_slice %3 {offsets = [0, 0, 8], sizes = [1, 8, 8], strides = [1, 1, 1]} : vector<1x8x32xf32> to vector<1x8x8xf32>
    %22 = vector.extract_strided_slice %4 {offsets = [0, 0, 8], sizes = [1, 8, 8], strides = [1, 1, 1]} : vector<1x8x32xf32> to vector<1x8x8xf32>
    "tpu.trace_start"() <{level = 10 : i32, message = "bqd,bkd->bqk"}> : () -> ()
    %cst_12 = arith.constant dense<0.000000e+00> : vector<1x8x8xf32>
    %23 = tpu.matmul %21, %22, %cst_12 {dimension_numbers = #tpu.dot_dimension_numbers<[2], [2], [1], [1], [0, 0, 0, 1, 1, 1], [0], [0]>} : vector<1x8x8xf32>, vector<1x8x8xf32>, vector<1x8x8xf32> -> vector<1x8x8xf32>
    "tpu.trace_stop"() : () -> ()
    %cst_13 = arith.constant dense<0xFF800000> : vector<1x8xf32>
    %24 = vector.multi_reduction <maximumf>, %23, %cst_13 [2] : vector<1x8x8xf32> to vector<1x8xf32>
    %25 = vector.shape_cast %24 : vector<1x8xf32> to vector<1x8x1xf32>
    %26 = vector.broadcast %25 : vector<1x8x1xf32> to vector<1x8x8xf32>
    %27 = arith.subf %23, %26 : vector<1x8x8xf32>
    %28 = math.exp %27 : vector<1x8x8xf32>
    %cst_14 = arith.constant dense<0.000000e+00> : vector<1x8xf32>
    %29 = vector.multi_reduction <add>, %28, %cst_14 [2] : vector<1x8x8xf32> to vector<1x8xf32>
    %30 = vector.shape_cast %29 : vector<1x8xf32> to vector<1x8x1xf32>
    %31 = tpu.reciprocal %30 : vector<1x8x1xf32> -> vector<1x8x1xf32>
    %32 = vector.broadcast %31 : vector<1x8x1xf32> to vector<1x8x8xf32>
    %33 = arith.mulf %28, %32 : vector<1x8x8xf32>
    %c0_15 = arith.constant 0 : index
    %c1 = arith.constant 1 : index
    %c0_16 = arith.constant 0 : index
    %c0_17 = arith.constant 0 : index
    %34 = vector.load %arg5[%c0_15, %c1, %c0_16, %c0_17] : memref<1x4x8x8xf32, #tpu.memory_space<vmem>>, vector<1x1x8x8xf32>
    %35 = vector.shape_cast %34 : vector<1x1x8x8xf32> to vector<1x8x8xf32>
    %36 = vector.shape_cast %33 : vector<1x8x8xf32> to vector<1x1x8x8xf32>
    tpu.vector_store %arg5[%c0_15, %c1, %c0_16, %c0_17], %36 {strides = array<i32>} : memref<1x4x8x8xf32, #tpu.memory_space<vmem>>, vector<1x1x8x8xf32>,
    %37 = vector.extract_strided_slice %3 {offsets = [0, 0, 16], sizes = [1, 8, 8], strides = [1, 1, 1]} : vector<1x8x32xf32> to vector<1x8x8xf32>
    %38 = vector.extract_strided_slice %4 {offsets = [0, 0, 16], sizes = [1, 8, 8], strides = [1, 1, 1]} : vector<1x8x32xf32> to vector<1x8x8xf32>
    "tpu.trace_start"() <{level = 10 : i32, message = "bqd,bkd->bqk"}> : () -> ()
    %cst_18 = arith.constant dense<0.000000e+00> : vector<1x8x8xf32>
    %39 = tpu.matmul %37, %38, %cst_18 {dimension_numbers = #tpu.dot_dimension_numbers<[2], [2], [1], [1], [0, 0, 0, 1, 1, 1], [0], [0]>} : vector<1x8x8xf32>, vector<1x8x8xf32>, vector<1x8x8xf32> -> vector<1x8x8xf32>
    "tpu.trace_stop"() : () -> ()
    %cst_19 = arith.constant dense<0xFF800000> : vector<1x8xf32>
    %40 = vector.multi_reduction <maximumf>, %39, %cst_19 [2] : vector<1x8x8xf32> to vector<1x8xf32>
    %41 = vector.shape_cast %40 : vector<1x8xf32> to vector<1x8x1xf32>
    %42 = vector.broadcast %41 : vector<1x8x1xf32> to vector<1x8x8xf32>
    %43 = arith.subf %39, %42 : vector<1x8x8xf32>
    %44 = math.exp %43 : vector<1x8x8xf32>
    %cst_20 = arith.constant dense<0.000000e+00> : vector<1x8xf32>
    %45 = vector.multi_reduction <add>, %44, %cst_20 [2] : vector<1x8x8xf32> to vector<1x8xf32>
    %46 = vector.shape_cast %45 : vector<1x8xf32> to vector<1x8x1xf32>
    %47 = tpu.reciprocal %46 : vector<1x8x1xf32> -> vector<1x8x1xf32>
    %48 = vector.broadcast %47 : vector<1x8x1xf32> to vector<1x8x8xf32>
    %49 = arith.mulf %44, %48 : vector<1x8x8xf32>
    %c0_21 = arith.constant 0 : index
    %c2 = arith.constant 2 : index
    %c0_22 = arith.constant 0 : index
    %c0_23 = arith.constant 0 : index
    %50 = vector.load %arg5[%c0_21, %c2, %c0_22, %c0_23] : memref<1x4x8x8xf32, #tpu.memory_space<vmem>>, vector<1x1x8x8xf32>
    %51 = vector.shape_cast %50 : vector<1x1x8x8xf32> to vector<1x8x8xf32>
    %52 = vector.shape_cast %49 : vector<1x8x8xf32> to vector<1x1x8x8xf32>
    tpu.vector_store %arg5[%c0_21, %c2, %c0_22, %c0_23], %52 {strides = array<i32>} : memref<1x4x8x8xf32, #tpu.memory_space<vmem>>, vector<1x1x8x8xf32>,
    %53 = vector.extract_strided_slice %3 {offsets = [0, 0, 24], sizes = [1, 8, 8], strides = [1, 1, 1]} : vector<1x8x32xf32> to vector<1x8x8xf32>
    %54 = vector.extract_strided_slice %4 {offsets = [0, 0, 24], sizes = [1, 8, 8], strides = [1, 1, 1]} : vector<1x8x32xf32> to vector<1x8x8xf32>
    "tpu.trace_start"() <{level = 10 : i32, message = "bqd,bkd->bqk"}> : () -> ()
    %cst_24 = arith.constant dense<0.000000e+00> : vector<1x8x8xf32>
    %55 = tpu.matmul %53, %54, %cst_24 {dimension_numbers = #tpu.dot_dimension_numbers<[2], [2], [1], [1], [0, 0, 0, 1, 1, 1], [0], [0]>} : vector<1x8x8xf32>, vector<1x8x8xf32>, vector<1x8x8xf32> -> vector<1x8x8xf32>
    "tpu.trace_stop"() : () -> ()
    %cst_25 = arith.constant dense<0xFF800000> : vector<1x8xf32>
    %56 = vector.multi_reduction <maximumf>, %55, %cst_25 [2] : vector<1x8x8xf32> to vector<1x8xf32>
    %57 = vector.shape_cast %56 : vector<1x8xf32> to vector<1x8x1xf32>
    %58 = vector.broadcast %57 : vector<1x8x1xf32> to vector<1x8x8xf32>
    %59 = arith.subf %55, %58 : vector<1x8x8xf32>
    %60 = math.exp %59 : vector<1x8x8xf32>
    %cst_26 = arith.constant dense<0.000000e+00> : vector<1x8xf32>
    %61 = vector.multi_reduction <add>, %60, %cst_26 [2] : vector<1x8x8xf32> to vector<1x8xf32>
    %62 = vector.shape_cast %61 : vector<1x8xf32> to vector<1x8x1xf32>
    %63 = tpu.reciprocal %62 : vector<1x8x1xf32> -> vector<1x8x1xf32>
    %64 = vector.broadcast %63 : vector<1x8x1xf32> to vector<1x8x8xf32>
    %65 = arith.mulf %60, %64 : vector<1x8x8xf32>
    %c0_27 = arith.constant 0 : index
    %c3 = arith.constant 3 : index
    %c0_28 = arith.constant 0 : index
    %c0_29 = arith.constant 0 : index
    %66 = vector.load %arg5[%c0_27, %c3, %c0_28, %c0_29] : memref<1x4x8x8xf32, #tpu.memory_space<vmem>>, vector<1x1x8x8xf32>
    %67 = vector.shape_cast %66 : vector<1x1x8x8xf32> to vector<1x8x8xf32>
    %68 = vector.shape_cast %65 : vector<1x8x8xf32> to vector<1x1x8x8xf32>
    tpu.vector_store %arg5[%c0_27, %c3, %c0_28, %c0_29], %68 {strides = array<i32>} : memref<1x4x8x8xf32, #tpu.memory_space<vmem>>, vector<1x1x8x8xf32>,
    return
  }
  func.func @transform_0(%arg0: i32, %arg1: i32) -> (i32, i32, i32) {
    %c0_i32 = arith.constant 0 : i32
    %c0_i32_0 = arith.constant 0 : i32
    %c0_i32_1 = arith.constant 0 : i32
    return %arg0, %c0_i32, %c0_i32_0 : i32, i32, i32
  }
  func.func @transform_1(%arg0: i32, %arg1: i32) -> (i32, i32) {
    %c0_i32 = arith.constant 0 : i32
    %c0_i32_0 = arith.constant 0 : i32
    %c0_i32_1 = arith.constant 0 : i32
    return %c0_i32, %c0_i32_0 : i32, i32
  }
  func.func @transform_2(%arg0: i32, %arg1: i32) -> (i32, i32) {
    %c0_i32 = arith.constant 0 : i32
    %c0_i32_0 = arith.constant 0 : i32
    %c0_i32_1 = arith.constant 0 : i32
    return %c0_i32, %c0_i32_0 : i32, i32
  }
  func.func @transform_3(%arg0: i32, %arg1: i32) -> (i32, i32, i32, i32) {
    %c0_i32 = arith.constant 0 : i32
    %c0_i32_0 = arith.constant 0 : i32
    %c0_i32_1 = arith.constant 0 : i32
    return %arg0, %c0_i32, %arg1, %c0_i32_0 : i32, i32, i32, i32
  }
}

</mosaic_0001>

<llo_original>
// kernel: tpu_custom_call.1
$region0: #{tpu_custom_call.1}
  #allocation0 [shape = 'u32[]', space=smem, size = 0x4, offset = 0x4, fixed_abs, tag = 'smem constant byte address 0x4 - core index']
  #allocation1 [shape = 'u32[72,128]{1,0:T(1,128)}', space=vmem, size = 0x9000, scoped, tag = 'internal scratch']
  #allocation2 [shape = 'f32[1,8,32]{2,1,0:T(8,128)}', space=vmem, size = 0x1000, scoped, tag = 'scratch operand']
  #allocation3 [shape = 'f32[1,8,32]{2,1,0:T(8,128)}', space=vmem, size = 0x1000, scoped, tag = 'scratch operand']
  %s0 = inlined_call_operand.hbm [shape: f32[2,8,32], index: 0, kind: input, shape index: {}]
  %s1 = inlined_call_operand.hbm [shape: f32[32,64], index: 1, kind: input, shape index: {}]
  %s2 = inlined_call_operand.vmem [shape: f32[1,64], index: 2, kind: input, shape index: {}]
  %s3 = inlined_call_operand.hbm [shape: f32[2,4,8,8], index: 3, kind: output, shape index: {}]
  %s4 = sld [smem:[#allocation0]]
  $region57: #{tpu_custom_call.1} parent=0
    _
  %s6 = ssub.s32 1, %s4
  %s7 = scalar_select 0, %s6, %s4
  $region1: #{tpu_custom_call.1} parent=0
    #allocation4 [shape = 'u8[8192]{0}', space=vmem, size = 0x2000, scoped, tag = 'input window, operand 0']
    #allocation5 [shape = 's32[2]{0}', space=sflag, size = 0x8, scoped, tag = 'scoped memory for tpu_custom_call.1']
    #allocation6 [shape = 's32[2]{0}', space=sflag, size = 0x8, scoped, tag = 'scoped memory for tpu_custom_call.1']
    #allocation7 [shape = 'u8[16384]{0}', space=vmem, size = 0x4000, scoped, tag = 'input window, operand 1, single buffered']
    #allocation8 [shape = 's32[1]{0}', space=sflag, size = 0x4, scoped, tag = 'scoped memory for tpu_custom_call.1']
    #allocation9 [shape = 'u8[32768]{0}', space=vmem, size = 0x8000, scoped, tag = 'output window, operand 0']
    %8 = vsyncpa [#allocation5], 0
    %s9 = scalar_lea.sflag [#allocation5], 1
    %10 = vsyncpa %s9, 0
    %11 = vsyncpa [#allocation8], 0
    %12 = vsyncpa [#allocation6], 0
    %s13 = scalar_lea.sflag [#allocation6], 1
    %14 = vsyncpa %s13, 0
    loop: start=0, step=1, limit=4
    $region2: #{tpu_custom_call.1} parent=1 // loop_pre_header
      _
    $region3: #{tpu_custom_call.1} parent=1 // loop_header
      %s16 = sphi 0, %s20
      %p17 = scmp.ge.s32.totalorder %s16, 4
      %s23 = sphi 0, %s35
      %s24 = sphi 0, %s31
      %s25 = sphi 0, %s23
      %s26 = sphi 0, %s24
      %s27 = sphi 0, %s25
      %s28 = sphi 0, %s26
      %s38 = sphi 0, %s40
      %s41 = sphi 0, %s38
      %s42 = sphi 0, %s41
      %s58 = sphi 0, %s42
      %s62 = sphi 0, %s62
      %s64 = sphi 0, %s62
      %s65 = sphi 0, %s64
      %s79 = sphi 0, %s65
      %s83 = sphi 0, %s83
      %s85 = sphi 0, %s83
      %s86 = sphi 0, %s85
      %s100 = sphi 0, %s86
      %s108 = sphi 0, %s110
      %s111 = sphi 0, %s108
      %s112 = sphi 0, %s111
      %s128 = sphi 0, %s112
    $region4: #{tpu_custom_call.1} parent=1 // loop_header_branch
      %19 = sbr.rel (%p17) target = $region8
    $region5: #{tpu_custom_call.1} parent=1 // loop_body
      %s21 = ssub.s32 %s16, 1
      %s22 = ssub.s32 %s16, 2
      %s29 = sadd.s32 1, %s24
      %p30 = scmp.ge.s32.totalorder %s29, 1
      %s31 = scalar_select %p30, 0, %s29
      %s32 = sadd.s32 1, %s23
      %s33 = scalar_select %p30, %s32, %s23
      %p34 = scmp.ge.s32.totalorder %s33, 2
      %s35 = scalar_select %p34, 0, %s33
      %s36 = ssub.s32 %s23, %s35
      %p37 = scmp.eq.s32.totalorder %s36, 0
      %s39 = sadd.s32 %s38, 1
      %s40 = scalar_select %p37, %s38, %s39
      %p43 = pneg %p37
      %p44 = scmp.eq.s32.totalorder %s16, 1
      %p45 = por %p43, %p44
      %p46 = scmp.ne.s32.totalorder %s38, %s41
      %p47 = scmp.eq.s32.totalorder %s16, 0
      %p48 = por %p46, %p47
      %p49 = scmp.ne.s32.totalorder %s38, %s41
      %p50 = scmp.eq.s32.totalorder %s21, 1
      %p51 = por %p49, %p50
      %p52 = scmp.ne.s32.totalorder %s41, %s42
      %p53 = scmp.eq.s32.totalorder %s21, 0
      %p54 = por %p52, %p53
      %p55 = scmp.ne.s32.totalorder %s41, %s42
      %p56 = scmp.eq.s32.totalorder %s22, 1
      %p57 = por %p55, %p56
      %p59 = scmp.ne.s32.totalorder %s42, %s58
      %p60 = scmp.eq.s32.totalorder %s22, 0
      %p61 = por %p59, %p60
      %s63 = sadd.s32 %s62, 1
      %p66 = scmp.eq.s32.totalorder %s16, 1
      %p67 = scmp.ne.s32.totalorder %s62, %s64
      %p68 = scmp.eq.s32.totalorder %s16, 0
      %p69 = por %p67, %p68
      %p70 = scmp.ne.s32.totalorder %s62, %s64
      %p71 = scmp.eq.s32.totalorder %s21, 1
      %p72 = por %p70, %p71
      %p73 = scmp.ne.s32.totalorder %s64, %s65
      %p74 = scmp.eq.s32.totalorder %s21, 0
      %p75 = por %p73, %p74
      %p76 = scmp.ne.s32.totalorder %s64, %s65
      %p77 = scmp.eq.s32.totalorder %s22, 1
      %p78 = por %p76, %p77
      %p80 = scmp.ne.s32.totalorder %s65, %s79
      %p81 = scmp.eq.s32.totalorder %s22, 0
      %p82 = por %p80, %p81
      %s84 = sadd.s32 %s83, 1
      %p87 = scmp.eq.s32.totalorder %s16, 1
      %p88 = scmp.ne.s32.totalorder %s83, %s85
      %p89 = scmp.eq.s32.totalorder %s16, 0
      %p90 = por %p88, %p89
      %p91 = scmp.ne.s32.totalorder %s83, %s85
      %p92 = scmp.eq.s32.totalorder %s21, 1
      %p93 = por %p91, %p92
      %p94 = scmp.ne.s32.totalorder %s85, %s86
      %p95 = scmp.eq.s32.totalorder %s21, 0
      %p96 = por %p94, %p95
      %p97 = scmp.ne.s32.totalorder %s85, %s86
      %p98 = scmp.eq.s32.totalorder %s22, 1
      %p99 = por %p97, %p98
      %p101 = scmp.ne.s32.totalorder %s86, %s100
      %p102 = scmp.eq.s32.totalorder %s22, 0
      %p103 = por %p101, %p102
      %s104 = ssub.s32 %s23, %s35
      %s105 = ssub.s32 %s24, %s31
      %s106 = sor.u32 %s104, %s105
      %p107 = scmp.eq.s32.totalorder %s106, 0
      %s109 = sadd.s32 %s108, 1
      %s110 = scalar_select %p107, %s108, %s109
      %p113 = pneg %p107
      %p114 = scmp.eq.s32.totalorder %s16, 1
      %p115 = por %p113, %p114
      %p116 = scmp.ne.s32.totalorder %s108, %s111
      %p117 = scmp.eq.s32.totalorder %s16, 0
      %p118 = por %p116, %p117
      %p119 = scmp.ne.s32.totalorder %s108, %s111
      %p120 = scmp.eq.s32.totalorder %s21, 1
      %p121 = por %p119, %p120
      %p122 = scmp.ne.s32.totalorder %s111, %s112
      %p123 = scmp.eq.s32.totalorder %s21, 0
      %p124 = por %p122, %p123
      %p125 = scmp.ne.s32.totalorder %s111, %s112
      %p126 = scmp.eq.s32.totalorder %s22, 1
      %p127 = por %p125, %p126
      %p129 = scmp.ne.s32.totalorder %s112, %s128
      %p130 = scmp.eq.s32.totalorder %s22, 0
      %p131 = por %p129, %p130
      %p132 = scmp.le.s32.totalorder 1, %s16
      %p133 = scmp.lt.s32.totalorder %s16, 3
      %p134 = pnand %p132, %p133
      %p135 = pneg %p134
      // Predicated region
      $region9: #{tpu_custom_call.1} parent=5 // pred_check
        _
      $region10: #{tpu_custom_call.1} parent=5 // pred_check_branch
        %137 = sbr.rel (%p134) target = $region12
      $region11: #{tpu_custom_call.1} parent=5 // pred_region
        %s138 = ssub.s32 %s16, 1
        // Predicated region
        $region13: #{tpu_custom_call.1} parent=11 // pred_check
          %p139 = pneg %p75
        $region14: #{tpu_custom_call.1} parent=11 // pred_check_branch
          %141 = sbr.rel (%p139) target = $region16
        $region15: #{tpu_custom_call.1} parent=11 // pred_region
          %143 = vsyncadd [#allocation8], 0
          %s144 = sshll.u32 %s1, 4
          %s145 = int_to_ptr.hbm [resolvable:$true] %s144
          %s146 = sshll.u32 [#allocation7], 4
          %s147 = int_to_ptr.vmem [resolvable:$true] %s146
          %152 = dma.hbm_to_vmem [thread:$0]  %s145, 512, %s147, [#allocation8], 128, 128, 8
        $region16: #{tpu_custom_call.1} parent=11 // pred_fallthru
          _
        // Predicated region
        $region17: #{tpu_custom_call.1} parent=11 // pred_check
          %p153 = pneg %p96
        $region18: #{tpu_custom_call.1} parent=11 // pred_check_branch
          %155 = sbr.rel (%p153) target = $region20
        $region19: #{tpu_custom_call.1} parent=11 // pred_region
          _
        $region20: #{tpu_custom_call.1} parent=11 // pred_fallthru
          _
      $region12: #{tpu_custom_call.1} parent=5 // pred_fallthru
        _
      %p156 = scmp.lt.s32.totalorder %s16, 2
      // Predicated region
      $region21: #{tpu_custom_call.1} parent=5 // pred_check
        %p157 = pneg %p156
      $region22: #{tpu_custom_call.1} parent=5 // pred_check_branch
        %159 = sbr.rel (%p157) target = $region24
      $region23: #{tpu_custom_call.1} parent=5 // pred_region
        // Predicated region
        $region25: #{tpu_custom_call.1} parent=23 // pred_check
          %p160 = pneg %p48
        $region26: #{tpu_custom_call.1} parent=23 // pred_check_branch
          %162 = sbr.rel (%p160) target = $region28
        $region27: #{tpu_custom_call.1} parent=23 // pred_region
          %s163 = sand.u32 %s38, 1
          %s164 = scalar_lea.sflag [#allocation5], %s163
          %s165 = sand.u32 %s38, 1
          %s166 = smul.addr %s165, 8
          %s167 = scalar_lea.vmem [#allocation4], %s166
          %169 = vsyncadd %s164, 0
          %s170 = smul.addr %s23, 8
          %s171 = scalar_lea.hbm %s0, %s170
          %s173 = sshll.u32 %s171, 4
          %s174 = int_to_ptr.hbm [resolvable:$true] %s173
          %s175 = sshll.u32 %s167, 4
          %s176 = int_to_ptr.vmem [resolvable:$true] %s175
          %178 = dma.hbm_to_vmem [thread:$0]  %s174, 128, %s176, %s164
        $region28: #{tpu_custom_call.1} parent=23 // pred_fallthru
          _
      $region24: #{tpu_custom_call.1} parent=5 // pred_fallthru
        _
      %p179 = scmp.le.s32.totalorder 1, %s16
      %p180 = scmp.lt.s32.totalorder %s16, 3
      %p181 = pnand %p179, %p180
      %p182 = pneg %p181
      // Predicated region
      $region29: #{tpu_custom_call.1} parent=5 // pred_check
        _
      $region30: #{tpu_custom_call.1} parent=5 // pred_check_branch
        %184 = sbr.rel (%p181) target = $region32
      $region31: #{tpu_custom_call.1} parent=5 // pred_region
        %s185 = ssub.s32 %s16, 1
        %s186 = sand.u32 %s41, 1
        %s187 = scalar_lea.sflag [#allocation5], %s186
        %s188 = sand.u32 %s41, 1
        %s189 = smul.addr %s188, 8
        %s190 = scalar_lea.vmem [#allocation4], %s189
        // Predicated region
        $region33: #{tpu_custom_call.1} parent=31 // pred_check
          %p191 = pneg %p54
        $region34: #{tpu_custom_call.1} parent=31 // pred_check_branch
          %193 = sbr.rel (%p191) target = $region36
        $region35: #{tpu_custom_call.1} parent=31 // pred_region
          %195 = dma.done %s187, 128
        $region36: #{tpu_custom_call.1} parent=31 // pred_fallthru
          _
        // Predicated region
        $region37: #{tpu_custom_call.1} parent=31 // pred_check
          %p196 = pneg %p75
        $region38: #{tpu_custom_call.1} parent=31 // pred_check_branch
          %198 = sbr.rel (%p196) target = $region40
        $region39: #{tpu_custom_call.1} parent=31 // pred_region
          %200 = dma.done [#allocation8], 512
        $region40: #{tpu_custom_call.1} parent=31 // pred_fallthru
          _
        %s201 = sand.u32 %s41, 1
        %s202 = scalar_lea.sflag [#allocation5], %s201
        %s203 = sand.u32 %s41, 1
        %s204 = smul.addr %s203, 8
        %s205 = scalar_lea.vmem [#allocation4], %s204
        %p206 = pneg %p54
        %p207 = pneg %p51
        %p208 = pneg %p75
        %p209 = pneg %p72
        %p210 = pneg %p96
        %p211 = pneg %p93
        %p212 = pneg %p124
        %p213 = pneg %p121
        %s214 = sand.u32 %s111, 1
        %s215 = scalar_lea.sflag [#allocation6], %s214
        %s216 = sand.u32 %s111, 1
        %s217 = smul.addr %s216, 32
        %s218 = scalar_lea.vmem [#allocation9], %s217
        %p219 = scmp.eq.s32.totalorder %s26, 0
        // Predicated region
        $region41: #{tpu_custom_call.1} parent=31 // pred_check
          %p220 = pneg %p219
        $region42: #{tpu_custom_call.1} parent=31 // pred_check_branch
          %222 = sbr.rel (%p220) target = $region44
        $region43: #{tpu_custom_call.1} parent=31 // pred_region
          %v223 = vld [vmem:[%s190] sm:$0xff]
          %v224 = vld [vmem:[#allocation7] sm:$0xff]
          %v225 = vld [vmem:[#allocation7 + $0x8] sm:$0xff]
          %v226 = vld [vmem:[#allocation7 + $0x10] sm:$0xff]
          %v227 = vld [vmem:[#allocation7 + $0x18] sm:$0xff]
          %v228 = vld [vmem:[%s2] sm:$0x1]
          %v230 = vperm.slane %v228, 0
          %vm232 = vcmask 261120
          %v234 = vsel %vm232, %v223, 0
          %236 = vmatpush.msra.mxu0 0.0
          %237 = vmatpush.msra.mxu0 0.0
          %238 = vmatpush.msra.mxu0 0.0
          %239 = vmatpush.msra.mxu0 0.0
          %240 = vmatpush.msra.mxu0 0.0
          %241 = vmatpush.msra.mxu0 0.0
          %242 = vmatpush.msra.mxu0 0.0
          %243 = vmatpush.msra.mxu0 0.0
          %244 = vmatpush.msra.mxu0 0.0
          %245 = vmatpush.msra.mxu0 0.0
          %246 = vmatpush.msra.mxu0 0.0
          %247 = vmatpush.msra.mxu0 0.0
          %248 = vmatpush.msra.mxu0 %v227
          %249 = vmatpush.msra.mxu0 %v226
          %250 = vmatpush.msra.mxu0 %v225
          %251 = vmatpush.msra.mxu0 %v224
          %252 = vmatmul.f32.gmra.mxu0 %v234
          %v253 = vpop.f32.mrf.mxu0
          %v254 = vadd.f32 %v230, %v253
          %255 = vdwg.mxu0
          %256 = vst.msk [vmem:[#allocation2] sm:$0xff] %vm232, %v254
          %258 = vrot.lane.b32.xlu0 %v254, 96
          %v259 = vpop.permute.xlu0 %258
          %261 = vst.msk [vmem:[#allocation3] sm:$0xff] %vm232, %v259
        $region44: #{tpu_custom_call.1} parent=31 // pred_fallthru
          _
        %v262 = vld [vmem:[#allocation2] sm:$0xff]
        %v263 = vld [vmem:[#allocation3] sm:$0xff]
        %vm264 = vcmask 64512
        %v266 = vsel %vm264, %v262, 0
        %v269 = vsel %vm264, %v263, 0
        %271 = vmatpush.xpose.msra.mxu0 0.0
        %272 = vmatpush.xpose.msra.mxu0 0.0
        %273 = vmatpush.xpose.msra.mxu0 0.0
        %274 = vmatpush.xpose.msra.mxu0 0.0
        %275 = vmatpush.xpose.msra.mxu0 0.0
        %276 = vmatpush.xpose.msra.mxu0 0.0
        %277 = vmatpush.xpose.msra.mxu0 0.0
        %278 = vmatpush.xpose.msra.mxu0 0.0
        %279 = vmatpush.xpose.msra.mxu0 0.0
        %280 = vmatpush.xpose.msra.mxu0 0.0
        %281 = vmatpush.xpose.msra.mxu0 0.0
        %282 = vmatpush.xpose.msra.mxu0 0.0
        %283 = vmatpush.xpose.msra.mxu0 0.0
        %284 = vmatpush.xpose.msra.mxu0 0.0
        %285 = vmatpush.xpose.msra.mxu0 0.0
        %286 = vmatpush.xpose.msra.mxu0 %v269
        %287 = vmatmul.f32.gmra.mxu0 %v266
        %v288 = vpop.f32.mrf.mxu0
        %v289 = vadd.f32 0.0, %v288
        %290 = vdwg.mxu0
        %v291 = vsel %vm264, %v289, -inf
        %292 = vmax.xlane.f32.xlu0 %v291
        %v293 = vpop.xlane.xlu0 %292
        %v294 = vsub.f32 %v289, %v293
        %v295 = vmul.f32 %v294, 1.442695
        %v296 = vpow.pop %v295
        %v297 = vsel %vm264, %v296, 0.0
        %298 = vadd.xlane.f32.xlu0 %v297
        %v299 = vpop.xlane.xlu0 %298
        %v300 = vrcp.pop %v299
        %v301 = vmul.f32 %v299, %v300
        %v302 = vsub.f32 1.0, %v301
        %v303 = vmul.f32 %v300, %v302
        %v304 = vadd.f32 %v300, %v303
        %vm305 = vweird.f32 %v299
        %vm306 = vweird.f32 %v300
        %vm307 = vmor %vm305, %vm306
        %v308 = vsel %vm307, %v300, %v304
        %v309 = vand.u32 2147483647, %v299
        %vm310 = vcmp.eq.f32.partialorder %v309, 8.507059e+37
        %v311 = vand.u32 %v299, 2147483648
        %v312 = vor.u32 1.1754944e-38, %v311
        %v313 = vsel %vm310, %v312, %v308
        %v314 = vmul.f32 %v296, %v313
        %315 = vst.msk [vmem:[%s218] sm:$0xff] %vm264, %v314
        %316 = vrot.lane.b32.xlu0 %v262, 120
        %v317 = vpop.permute.xlu0 %316
        %318 = vrot.lane.b32.xlu0 %v263, 120
        %v319 = vpop.permute.xlu0 %318
        %v320 = vsel %vm264, %v317, 0
        %v322 = vsel %vm264, %v319, 0
        %324 = vmatpush.xpose.msra.mxu0 0.0
        %325 = vmatpush.xpose.msra.mxu0 0.0
        %326 = vmatpush.xpose.msra.mxu0 0.0
        %327 = vmatpush.xpose.msra.mxu0 0.0
        %328 = vmatpush.xpose.msra.mxu0 0.0
        %329 = vmatpush.xpose.msra.mxu0 0.0
        %330 = vmatpush.xpose.msra.mxu0 0.0
        %331 = vmatpush.xpose.msra.mxu0 0.0
        %332 = vmatpush.xpose.msra.mxu0 0.0
        %333 = vmatpush.xpose.msra.mxu0 0.0
        %334 = vmatpush.xpose.msra.mxu0 0.0
        %335 = vmatpush.xpose.msra.mxu0 0.0
        %336 = vmatpush.xpose.msra.mxu0 0.0
        %337 = vmatpush.xpose.msra.mxu0 0.0
        %338 = vmatpush.xpose.msra.mxu0 0.0
        %339 = vmatpush.xpose.msra.mxu0 %v322
        %340 = vmatmul.f32.gmra.mxu0 %v320
        %v341 = vpop.f32.mrf.mxu0
        %v342 = vadd.f32 0.0, %v341
        %343 = vdwg.mxu0
        %v344 = vsel %vm264, %v342, -inf
        %345 = vmax.xlane.f32.xlu0 %v344
        %v346 = vpop.xlane.xlu0 %345
        %v347 = vsub.f32 %v342, %v346
        %v348 = vmul.f32 %v347, 1.442695
        %v349 = vpow.pop %v348
        %v350 = vsel %vm264, %v349, 0.0
        %351 = vadd.xlane.f32.xlu0 %v350
        %v352 = vpop.xlane.xlu0 %351
        %v353 = vrcp.pop %v352
        %v354 = vmul.f32 %v352, %v353
        %v355 = vsub.f32 1.0, %v354
        %v356 = vmul.f32 %v353, %v355
        %v357 = vadd.f32 %v353, %v356
        %vm358 = vweird.f32 %v352
        %vm359 = vweird.f32 %v353
        %vm360 = vmor %vm358, %vm359
        %v361 = vsel %vm360, %v353, %v357
        %v362 = vand.u32 2147483647, %v352
        %vm363 = vcmp.eq.f32.partialorder %v362, 8.507059e+37
        %v364 = vand.u32 %v352, 2147483648
        %v365 = vor.u32 1.1754944e-38, %v364
        %v366 = vsel %vm363, %v365, %v361
        %v367 = vmul.f32 %v349, %v366
        %s368 = scalar_lea.vmem %s218, 8 [#allocation9]
        %369 = vst.msk [vmem:[%s368] sm:$0xff] %vm264, %v367
        %370 = vrot.lane.b32.xlu0 %v262, 112
        %v371 = vpop.permute.xlu0 %370
        %372 = vrot.lane.b32.xlu0 %v263, 112
        %v373 = vpop.permute.xlu0 %372
        %v374 = vsel %vm264, %v371, 0
        %v376 = vsel %vm264, %v373, 0
        %378 = vmatpush.xpose.msra.mxu0 0.0
        %379 = vmatpush.xpose.msra.mxu0 0.0
        %380 = vmatpush.xpose.msra.mxu0 0.0
        %381 = vmatpush.xpose.msra.mxu0 0.0
        %382 = vmatpush.xpose.msra.mxu0 0.0
        %383 = vmatpush.xpose.msra.mxu0 0.0
        %384 = vmatpush.xpose.msra.mxu0 0.0
        %385 = vmatpush.xpose.msra.mxu0 0.0
        %386 = vmatpush.xpose.msra.mxu0 0.0
        %387 = vmatpush.xpose.msra.mxu0 0.0
        %388 = vmatpush.xpose.msra.mxu0 0.0
        %389 = vmatpush.xpose.msra.mxu0 0.0
        %390 = vmatpush.xpose.msra.mxu0 0.0
        %391 = vmatpush.xpose.msra.mxu0 0.0
        %392 = vmatpush.xpose.msra.mxu0 0.0
        %393 = vmatpush.xpose.msra.mxu0 %v376
        %394 = vmatmul.f32.gmra.mxu0 %v374
        %v395 = vpop.f32.mrf.mxu0
        %v396 = vadd.f32 0.0, %v395
        %397 = vdwg.mxu0
        %v398 = vsel %vm264, %v396, -inf
        %399 = vmax.xlane.f32.xlu0 %v398
        %v400 = vpop.xlane.xlu0 %399
        %v401 = vsub.f32 %v396, %v400
        %v402 = vmul.f32 %v401, 1.442695
        %v403 = vpow.pop %v402
        %v404 = vsel %vm264, %v403, 0.0
        %405 = vadd.xlane.f32.xlu0 %v404
        %v406 = vpop.xlane.xlu0 %405
        %v407 = vrcp.pop %v406
        %v408 = vmul.f32 %v406, %v407
        %v409 = vsub.f32 1.0, %v408
        %v410 = vmul.f32 %v407, %v409
        %v411 = vadd.f32 %v407, %v410
        %vm412 = vweird.f32 %v406
        %vm413 = vweird.f32 %v407
        %vm414 = vmor %vm412, %vm413
        %v415 = vsel %vm414, %v407, %v411
        %v416 = vand.u32 2147483647, %v406
        %vm417 = vcmp.eq.f32.partialorder %v416, 8.507059e+37
        %v418 = vand.u32 %v406, 2147483648
        %v419 = vor.u32 1.1754944e-38, %v418
        %v420 = vsel %vm417, %v419, %v415
        %v421 = vmul.f32 %v403, %v420
        %s422 = scalar_lea.vmem %s218, 16 [#allocation9]
        %423 = vst.msk [vmem:[%s422] sm:$0xff] %vm264, %v421
        %424 = vrot.lane.b32.xlu0 %v262, 104
        %v425 = vpop.permute.xlu0 %424
        %426 = vrot.lane.b32.xlu0 %v263, 104
        %v427 = vpop.permute.xlu0 %426
        %v428 = vsel %vm264, %v425, 0
        %v430 = vsel %vm264, %v427, 0
        %432 = vmatpush.xpose.msra.mxu0 0.0
        %433 = vmatpush.xpose.msra.mxu0 0.0
        %434 = vmatpush.xpose.msra.mxu0 0.0
        %435 = vmatpush.xpose.msra.mxu0 0.0
        %436 = vmatpush.xpose.msra.mxu0 0.0
        %437 = vmatpush.xpose.msra.mxu0 0.0
        %438 = vmatpush.xpose.msra.mxu0 0.0
        %439 = vmatpush.xpose.msra.mxu0 0.0
        %440 = vmatpush.xpose.msra.mxu0 0.0
        %441 = vmatpush.xpose.msra.mxu0 0.0
        %442 = vmatpush.xpose.msra.mxu0 0.0
        %443 = vmatpush.xpose.msra.mxu0 0.0
        %444 = vmatpush.xpose.msra.mxu0 0.0
        %445 = vmatpush.xpose.msra.mxu0 0.0
        %446 = vmatpush.xpose.msra.mxu0 0.0
        %447 = vmatpush.xpose.msra.mxu0 %v430
        %448 = vmatmul.f32.gmra.mxu0 %v428
        %v449 = vpop.f32.mrf.mxu0
        %v450 = vadd.f32 0.0, %v449
        %451 = vdwg.mxu0
        %v452 = vsel %vm264, %v450, -inf
        %453 = vmax.xlane.f32.xlu0 %v452
        %v454 = vpop.xlane.xlu0 %453
        %v455 = vsub.f32 %v450, %v454
        %v456 = vmul.f32 %v455, 1.442695
        %v457 = vpow.pop %v456
        %v458 = vsel %vm264, %v457, 0.0
        %459 = vadd.xlane.f32.xlu0 %v458
        %v460 = vpop.xlane.xlu0 %459
        %v461 = vrcp.pop %v460
        %v462 = vmul.f32 %v460, %v461
        %v463 = vsub.f32 1.0, %v462
        %v464 = vmul.f32 %v461, %v463
        %v465 = vadd.f32 %v461, %v464
        %vm466 = vweird.f32 %v460
        %vm467 = vweird.f32 %v461
        %vm468 = vmor %vm466, %vm467
        %v469 = vsel %vm468, %v461, %v465
        %v470 = vand.u32 2147483647, %v460
        %vm471 = vcmp.eq.f32.partialorder %v470, 8.507059e+37
        %v472 = vand.u32 %v460, 2147483648
        %v473 = vor.u32 1.1754944e-38, %v472
        %v474 = vsel %vm471, %v473, %v469
        %v475 = vmul.f32 %v457, %v474
        %s476 = scalar_lea.vmem %s218, 24 [#allocation9]
        %477 = vst.msk [vmem:[%s476] sm:$0xff] %vm264, %v475
        %s478 = sand.u32 %s111, 1
        %s479 = scalar_lea.sflag [#allocation6], %s478
        %s480 = sand.u32 %s111, 1
        %s481 = smul.addr %s480, 32
        %s482 = scalar_lea.vmem [#allocation9], %s481
        // Predicated region
        $region45: #{tpu_custom_call.1} parent=31 // pred_check
          %p483 = pneg %p121
        $region46: #{tpu_custom_call.1} parent=31 // pred_check_branch
          %485 = sbr.rel (%p483) target = $region48
        $region47: #{tpu_custom_call.1} parent=31 // pred_region
          %487 = vsyncadd %s479, 0
          %s488 = smul.addr %s25, 4
          %s489 = sadd.s32 %s26, %s488
          %s490 = smul.addr %s489, 8
          %s491 = scalar_lea.hbm %s3, %s490
          %s492 = sshll.u32 %s482, 4
          %s493 = int_to_ptr.vmem [resolvable:$true] %s492
          %s494 = sshll.u32 %s491, 4
          %s495 = int_to_ptr.hbm [resolvable:$true] %s494
          %500 = dma.vmem_to_hbm [thread:$0]  %s493, 512, %s495, %s479, 128, 128, 8
        $region48: #{tpu_custom_call.1} parent=31 // pred_fallthru
          _
      $region32: #{tpu_custom_call.1} parent=5 // pred_fallthru
        _
      %p501 = scmp.le.s32.totalorder 2, %s16
      // Predicated region
      $region49: #{tpu_custom_call.1} parent=5 // pred_check
        %p502 = pneg %p501
      $region50: #{tpu_custom_call.1} parent=5 // pred_check_branch
        %504 = sbr.rel (%p502) target = $region52
      $region51: #{tpu_custom_call.1} parent=5 // pred_region
        %s505 = ssub.s32 %s16, 2
        // Predicated region
        $region53: #{tpu_custom_call.1} parent=51 // pred_check
          %p506 = pneg %p127
        $region54: #{tpu_custom_call.1} parent=51 // pred_check_branch
          %508 = sbr.rel (%p506) target = $region56
        $region55: #{tpu_custom_call.1} parent=51 // pred_region
          %s509 = sand.u32 %s112, 1
          %s510 = scalar_lea.sflag [#allocation6], %s509
          %s511 = sand.u32 %s112, 1
          %s512 = smul.addr %s511, 32
          %s513 = scalar_lea.vmem [#allocation9], %s512
          %515 = dma.done %s510, 512
        $region56: #{tpu_custom_call.1} parent=51 // pred_fallthru
          _
      $region52: #{tpu_custom_call.1} parent=5 // pred_fallthru
        _
    $region6: #{tpu_custom_call.1} parent=1 // loop_footer
      %s20 = sadd.s32 1, %s16
    $region7: #{tpu_custom_call.1} parent=1 // loop_footer_branch
      %15 = sbr.rel target = $region3
    $region8: #{tpu_custom_call.1} parent=1 // loop_exit
      _
    %516 = vsyncpa [#allocation5], 1
    %s517 = scalar_lea.sflag [#allocation5], 1
    %518 = vsyncpa %s517, 1
    %519 = vsyncpa [#allocation8], 1
    %520 = vsyncpa [#allocation6], 1
    %s521 = scalar_lea.sflag [#allocation6], 1
    %522 = vsyncpa %s521, 1

// kernel: tpu_custom_call.1
$region0: #{tpu_custom_call.1}
  #allocation0 [shape = 'u32[]', space=smem, size = 0x4, offset = 0x4, fixed_abs, tag = 'smem constant byte address 0x4 - core index']
  #allocation1 [shape = 'u32[72,128]{1,0:T(1,128)}', space=vmem, size = 0x9000, scoped, tag = 'internal scratch']
  #allocation2 [shape = 'f32[1,8,32]{2,1,0:T(8,128)}', space=vmem, size = 0x1000, scoped, tag = 'scratch operand']
  #allocation3 [shape = 'f32[1,8,32]{2,1,0:T(8,128)}', space=vmem, size = 0x1000, scoped, tag = 'scratch operand']
  %s0 = inlined_call_operand.hbm [shape: f32[2,8,32], index: 0, kind: input, shape index: {}]
  %s1 = inlined_call_operand.hbm [shape: f32[32,64], index: 1, kind: input, shape index: {}]
  %s2 = inlined_call_operand.vmem [shape: f32[1,64], index: 2, kind: input, shape index: {}]
  %s3 = inlined_call_operand.hbm [shape: f32[2,4,8,8], index: 3, kind: output, shape index: {}]
  %s4 = sld [smem:[#allocation0]]
  $region57: #{tpu_custom_call.1} parent=0
    _
  %s6 = ssub.s32 1, %s4
  %s7 = scalar_select 0, %s6, %s4
  $region1: #{tpu_custom_call.1} parent=0
    #allocation4 [shape = 'u8[8192]{0}', space=vmem, size = 0x2000, scoped, tag = 'input window, operand 0']
    #allocation5 [shape = 's32[2]{0}', space=sflag, size = 0x8, scoped, tag = 'scoped memory for tpu_custom_call.1']
    #allocation6 [shape = 's32[2]{0}', space=sflag, size = 0x8, scoped, tag = 'scoped memory for tpu_custom_call.1']
    #allocation7 [shape = 'u8[16384]{0}', space=vmem, size = 0x4000, scoped, tag = 'input window, operand 1, single buffered']
    #allocation8 [shape = 's32[1]{0}', space=sflag, size = 0x4, scoped, tag = 'scoped memory for tpu_custom_call.1']
    #allocation9 [shape = 'u8[32768]{0}', space=vmem, size = 0x8000, scoped, tag = 'output window, operand 0']
    %8 = vsyncpa [#allocation5], 0
    %s9 = scalar_lea.sflag [#allocation5], 1
    %10 = vsyncpa %s9, 0
    %11 = vsyncpa [#allocation8], 0
    %12 = vsyncpa [#allocation6], 0
    %s13 = scalar_lea.sflag [#allocation6], 1
    %14 = vsyncpa %s13, 0
    loop: start=0, step=1, limit=4
    $region2: #{tpu_custom_call.1} parent=1 // loop_pre_header
      _
    $region3: #{tpu_custom_call.1} parent=1 // loop_header
      %s16 = sphi 0, %s20
      %p17 = scmp.ge.s32.totalorder %s16, 4
      %s23 = sphi 0, %s35
      %s24 = sphi 0, %s31
      %s25 = sphi 0, %s23
      %s26 = sphi 0, %s24
      %s27 = sphi 0, %s25
      %s28 = sphi 0, %s26
      %s38 = sphi 0, %s40
      %s41 = sphi 0, %s38
      %s42 = sphi 0, %s41
      %s58 = sphi 0, %s42
      %s62 = sphi 0, %s62
      %s64 = sphi 0, %s62
      %s65 = sphi 0, %s64
      %s79 = sphi 0, %s65
      %s83 = sphi 0, %s83
      %s85 = sphi 0, %s83
      %s86 = sphi 0, %s85
      %s100 = sphi 0, %s86
      %s108 = sphi 0, %s110
      %s111 = sphi 0, %s108
      %s112 = sphi 0, %s111
      %s128 = sphi 0, %s112
    $region4: #{tpu_custom_call.1} parent=1 // loop_header_branch
      %19 = sbr.rel (%p17) target = $region8
    $region5: #{tpu_custom_call.1} parent=1 // loop_body
      %s21 = ssub.s32 %s16, 1
      %s22 = ssub.s32 %s16, 2
      %s29 = sadd.s32 1, %s24
      %p30 = scmp.ge.s32.totalorder %s29, 1
      %s31 = scalar_select %p30, 0, %s29
      %s32 = sadd.s32 1, %s23
      %s33 = scalar_select %p30, %s32, %s23
      %p34 = scmp.ge.s32.totalorder %s33, 2
      %s35 = scalar_select %p34, 0, %s33
      %s36 = ssub.s32 %s23, %s35
      %p37 = scmp.eq.s32.totalorder %s36, 0
      %s39 = sadd.s32 %s38, 1
      %s40 = scalar_select %p37, %s38, %s39
      %p43 = pneg %p37
      %p44 = scmp.eq.s32.totalorder %s16, 1
      %p45 = por %p43, %p44
      %p46 = scmp.ne.s32.totalorder %s38, %s41
      %p47 = scmp.eq.s32.totalorder %s16, 0
      %p48 = por %p46, %p47
      %p49 = scmp.ne.s32.totalorder %s38, %s41
      %p50 = scmp.eq.s32.totalorder %s21, 1
      %p51 = por %p49, %p50
      %p52 = scmp.ne.s32.totalorder %s41, %s42
      %p53 = scmp.eq.s32.totalorder %s21, 0
      %p54 = por %p52, %p53
      %p55 = scmp.ne.s32.totalorder %s41, %s42
      %p56 = scmp.eq.s32.totalorder %s22, 1
      %p57 = por %p55, %p56
      %p59 = scmp.ne.s32.totalorder %s42, %s58
      %p60 = scmp.eq.s32.totalorder %s22, 0
      %p61 = por %p59, %p60
      %s63 = sadd.s32 %s62, 1
      %p66 = scmp.eq.s32.totalorder %s16, 1
      %p67 = scmp.ne.s32.totalorder %s62, %s64
      %p68 = scmp.eq.s32.totalorder %s16, 0
      %p69 = por %p67, %p68
      %p70 = scmp.ne.s32.totalorder %s62, %s64
      %p71 = scmp.eq.s32.totalorder %s21, 1
      %p72 = por %p70, %p71
      %p73 = scmp.ne.s32.totalorder %s64, %s65
      %p74 = scmp.eq.s32.totalorder %s21, 0
      %p75 = por %p73, %p74
      %p76 = scmp.ne.s32.totalorder %s64, %s65
      %p77 = scmp.eq.s32.totalorder %s22, 1
      %p78 = por %p76, %p77
      %p80 = scmp.ne.s32.totalorder %s65, %s79
      %p81 = scmp.eq.s32.totalorder %s22, 0
      %p82 = por %p80, %p81
      %s84 = sadd.s32 %s83, 1
      %p87 = scmp.eq.s32.totalorder %s16, 1
      %p88 = scmp.ne.s32.totalorder %s83, %s85
      %p89 = scmp.eq.s32.totalorder %s16, 0
      %p90 = por %p88, %p89
      %p91 = scmp.ne.s32.totalorder %s83, %s85
      %p92 = scmp.eq.s32.totalorder %s21, 1
      %p93 = por %p91, %p92
      %p94 = scmp.ne.s32.totalorder %s85, %s86
      %p95 = scmp.eq.s32.totalorder %s21, 0
      %p96 = por %p94, %p95
      %p97 = scmp.ne.s32.totalorder %s85, %s86
      %p98 = scmp.eq.s32.totalorder %s22, 1
      %p99 = por %p97, %p98
      %p101 = scmp.ne.s32.totalorder %s86, %s100
      %p102 = scmp.eq.s32.totalorder %s22, 0
      %p103 = por %p101, %p102
      %s104 = ssub.s32 %s23, %s35
      %s105 = ssub.s32 %s24, %s31
      %s106 = sor.u32 %s104, %s105
      %p107 = scmp.eq.s32.totalorder %s106, 0
      %s109 = sadd.s32 %s108, 1
      %s110 = scalar_select %p107, %s108, %s109
      %p113 = pneg %p107
      %p114 = scmp.eq.s32.totalorder %s16, 1
      %p115 = por %p113, %p114
      %p116 = scmp.ne.s32.totalorder %s108, %s111
      %p117 = scmp.eq.s32.totalorder %s16, 0
      %p118 = por %p116, %p117
      %p119 = scmp.ne.s32.totalorder %s108, %s111
      %p120 = scmp.eq.s32.totalorder %s21, 1
      %p121 = por %p119, %p120
      %p122 = scmp.ne.s32.totalorder %s111, %s112
      %p123 = scmp.eq.s32.totalorder %s21, 0
      %p124 = por %p122, %p123
      %p125 = scmp.ne.s32.totalorder %s111, %s112
      %p126 = scmp.eq.s32.totalorder %s22, 1
      %p127 = por %p125, %p126
      %p129 = scmp.ne.s32.totalorder %s112, %s128
      %p130 = scmp.eq.s32.totalorder %s22, 0
      %p131 = por %p129, %p130
      %p132 = scmp.le.s32.totalorder 1, %s16
      %p133 = scmp.lt.s32.totalorder %s16, 3
      %p134 = pnand %p132, %p133
      %p135 = pneg %p134
      // Predicated region
      $region9: #{tpu_custom_call.1} parent=5 // pred_check
        _
      $region10: #{tpu_custom_call.1} parent=5 // pred_check_branch
        %137 = sbr.rel (%p134) target = $region12
      $region11: #{tpu_custom_call.1} parent=5 // pred_region
        %s138 = ssub.s32 %s16, 1
        // Predicated region
        $region13: #{tpu_custom_call.1} parent=11 // pred_check
          %p139 = pneg %p75
        $region14: #{tpu_custom_call.1} parent=11 // pred_check_branch
          %141 = sbr.rel (%p139) target = $region16
        $region15: #{tpu_custom_call.1} parent=11 // pred_region
          %143 = vsyncadd [#allocation8], 0
          %s144 = sshll.u32 %s1, 4
          %s145 = int_to_ptr.hbm [resolvable:$true] %s144
          %s146 = sshll.u32 [#allocation7], 4
          %s147 = int_to_ptr.vmem [resolvable:$true] %s146
          %152 = dma.hbm_to_vmem [thread:$0]  %s145, 512, %s147, [#allocation8], 128, 128, 8
        $region16: #{tpu_custom_call.1} parent=11 // pred_fallthru
          _
        // Predicated region
        $region17: #{tpu_custom_call.1} parent=11 // pred_check
          %p153 = pneg %p96
        $region18: #{tpu_custom_call.1} parent=11 // pred_check_branch
          %155 = sbr.rel (%p153) target = $region20
        $region19: #{tpu_custom_call.1} parent=11 // pred_region
          _
        $region20: #{tpu_custom_call.1} parent=11 // pred_fallthru
          _
      $region12: #{tpu_custom_call.1} parent=5 // pred_fallthru
        _
      %p156 = scmp.lt.s32.totalorder %s16, 2
      // Predicated region
      $region21: #{tpu_custom_call.1} parent=5 // pred_check
        %p157 = pneg %p156
      $region22: #{tpu_custom_call.1} parent=5 // pred_check_branch
        %159 = sbr.rel (%p157) target = $region24
      $region23: #{tpu_custom_call.1} parent=5 // pred_region
        // Predicated region
        $region25: #{tpu_custom_call.1} parent=23 // pred_check
          %p160 = pneg %p48
        $region26: #{tpu_custom_call.1} parent=23 // pred_check_branch
          %162 = sbr.rel (%p160) target = $region28
        $region27: #{tpu_custom_call.1} parent=23 // pred_region
          %s163 = sand.u32 %s38, 1
          %s164 = scalar_lea.sflag [#allocation5], %s163
          %s165 = sand.u32 %s38, 1
          %s166 = smul.addr %s165, 8
          %s167 = scalar_lea.vmem [#allocation4], %s166
          %169 = vsyncadd %s164, 0
          %s170 = smul.addr %s23, 8
          %s171 = scalar_lea.hbm %s0, %s170
          %s173 = sshll.u32 %s171, 4
          %s174 = int_to_ptr.hbm [resolvable:$true] %s173
          %s175 = sshll.u32 %s167, 4
          %s176 = int_to_ptr.vmem [resolvable:$true] %s175
          %178 = dma.hbm_to_vmem [thread:$0]  %s174, 128, %s176, %s164
        $region28: #{tpu_custom_call.1} parent=23 // pred_fallthru
          _
      $region24: #{tpu_custom_call.1} parent=5 // pred_fallthru
        _
      %p179 = scmp.le.s32.totalorder 1, %s16
      %p180 = scmp.lt.s32.totalorder %s16, 3
      %p181 = pnand %p179, %p180
      %p182 = pneg %p181
      // Predicated region
      $region29: #{tpu_custom_call.1} parent=5 // pred_check
        _
      $region30: #{tpu_custom_call.1} parent=5 // pred_check_branch
        %184 = sbr.rel (%p181) target = $region32
      $region31: #{tpu_custom_call.1} parent=5 // pred_region
        %s185 = ssub.s32 %s16, 1
        %s186 = sand.u32 %s41, 1
        %s187 = scalar_lea.sflag [#allocation5], %s186
        %s188 = sand.u32 %s41, 1
        %s189 = smul.addr %s188, 8
        %s190 = scalar_lea.vmem [#allocation4], %s189
        // Predicated region
        $region33: #{tpu_custom_call.1} parent=31 // pred_check
          %p191 = pneg %p54
        $region34: #{tpu_custom_call.1} parent=31 // pred_check_branch
          %193 = sbr.rel (%p191) target = $region36
        $region35: #{tpu_custom_call.1} parent=31 // pred_region
          %195 = dma.done %s187, 128
        $region36: #{tpu_custom_call.1} parent=31 // pred_fallthru
          _
        // Predicated region
        $region37: #{tpu_custom_call.1} parent=31 // pred_check
          %p196 = pneg %p75
        $region38: #{tpu_custom_call.1} parent=31 // pred_check_branch
          %198 = sbr.rel (%p196) target = $region40
        $region39: #{tpu_custom_call.1} parent=31 // pred_region
          %200 = dma.done [#allocation8], 512
        $region40: #{tpu_custom_call.1} parent=31 // pred_fallthru
          _
        %s201 = sand.u32 %s41, 1
        %s202 = scalar_lea.sflag [#allocation5], %s201
        %s203 = sand.u32 %s41, 1
        %s204 = smul.addr %s203, 8
        %s205 = scalar_lea.vmem [#allocation4], %s204
        %p206 = pneg %p54
        %p207 = pneg %p51
        %p208 = pneg %p75
        %p209 = pneg %p72
        %p210 = pneg %p96
        %p211 = pneg %p93
        %p212 = pneg %p124
        %p213 = pneg %p121
        %s214 = sand.u32 %s111, 1
        %s215 = scalar_lea.sflag [#allocation6], %s214
        %s216 = sand.u32 %s111, 1
        %s217 = smul.addr %s216, 32
        %s218 = scalar_lea.vmem [#allocation9], %s217
        %p219 = scmp.eq.s32.totalorder %s26, 0
        // Predicated region
        $region41: #{tpu_custom_call.1} parent=31 // pred_check
          %p220 = pneg %p219
        $region42: #{tpu_custom_call.1} parent=31 // pred_check_branch
          %222 = sbr.rel (%p220) target = $region44
        $region43: #{tpu_custom_call.1} parent=31 // pred_region
          %v223 = vld [vmem:[%s190] sm:$0xff]
          %v224 = vld [vmem:[#allocation7] sm:$0xff]
          %v225 = vld [vmem:[#allocation7 + $0x8] sm:$0xff]
          %v226 = vld [vmem:[#allocation7 + $0x10] sm:$0xff]
          %v227 = vld [vmem:[#allocation7 + $0x18] sm:$0xff]
          %v228 = vld [vmem:[%s2] sm:$0x1]
          %v230 = vperm.slane %v228, 0
          %vm232 = vcmask 261120
          %v234 = vsel %vm232, %v223, 0
          %236 = vmatpush.msra.mxu0 0.0
          %237 = vmatpush.msra.mxu0 0.0
          %238 = vmatpush.msra.mxu0 0.0
          %239 = vmatpush.msra.mxu0 0.0
          %240 = vmatpush.msra.mxu0 0.0
          %241 = vmatpush.msra.mxu0 0.0
          %242 = vmatpush.msra.mxu0 0.0
          %243 = vmatpush.msra.mxu0 0.0
          %244 = vmatpush.msra.mxu0 0.0
          %245 = vmatpush.msra.mxu0 0.0
          %246 = vmatpush.msra.mxu0 0.0
          %247 = vmatpush.msra.mxu0 0.0
          %248 = vmatpush.msra.mxu0 %v227
          %249 = vmatpush.msra.mxu0 %v226
          %250 = vmatpush.msra.mxu0 %v225
          %251 = vmatpush.msra.mxu0 %v224
          %252 = vmatmul.f32.gmra.mxu0 %v234
          %v253 = vpop.f32.mrf.mxu0
          %v254 = vadd.f32 %v230, %v253
          %255 = vdwg.mxu0
          %256 = vst.msk [vmem:[#allocation2] sm:$0xff] %vm232, %v254
          %258 = vrot.lane.b32.xlu0 %v254, 96
          %v259 = vpop.permute.xlu0 %258
          %261 = vst.msk [vmem:[#allocation3] sm:$0xff] %vm232, %v259
        $region44: #{tpu_custom_call.1} parent=31 // pred_fallthru
          _
        %v262 = vld [vmem:[#allocation2] sm:$0xff]
        %v263 = vld [vmem:[#allocation3] sm:$0xff]
        %vm264 = vcmask 64512
        %v266 = vsel %vm264, %v262, 0
        %v269 = vsel %vm264, %v263, 0
        %271 = vmatpush.xpose.msra.mxu0 0.0
        %272 = vmatpush.xpose.msra.mxu0 0.0
        %273 = vmatpush.xpose.msra.mxu0 0.0
        %274 = vmatpush.xpose.msra.mxu0 0.0
        %275 = vmatpush.xpose.msra.mxu0 0.0
        %276 = vmatpush.xpose.msra.mxu0 0.0
        %277 = vmatpush.xpose.msra.mxu0 0.0
        %278 = vmatpush.xpose.msra.mxu0 0.0
        %279 = vmatpush.xpose.msra.mxu0 0.0
        %280 = vmatpush.xpose.msra.mxu0 0.0
        %281 = vmatpush.xpose.msra.mxu0 0.0
        %282 = vmatpush.xpose.msra.mxu0 0.0
        %283 = vmatpush.xpose.msra.mxu0 0.0
        %284 = vmatpush.xpose.msra.mxu0 0.0
        %285 = vmatpush.xpose.msra.mxu0 0.0
        %286 = vmatpush.xpose.msra.mxu0 %v269
        %287 = vmatmul.f32.gmra.mxu0 %v266
        %v288 = vpop.f32.mrf.mxu0
        %v289 = vadd.f32 0.0, %v288
        %290 = vdwg.mxu0
        %v291 = vsel %vm264, %v289, -inf
        %292 = vmax.xlane.f32.xlu0 %v291
        %v293 = vpop.xlane.xlu0 %292
        %v294 = vsub.f32 %v289, %v293
        %v295 = vmul.f32 %v294, 1.442695
        %v296 = vpow.pop %v295
        %v297 = vsel %vm264, %v296, 0.0
        %298 = vadd.xlane.f32.xlu0 %v297
        %v299 = vpop.xlane.xlu0 %298
        %v300 = vrcp.pop %v299
        %v301 = vmul.f32 %v299, %v300
        %v302 = vsub.f32 1.0, %v301
        %v303 = vmul.f32 %v300, %v302
        %v304 = vadd.f32 %v300, %v303
        %vm305 = vweird.f32 %v299
        %vm306 = vweird.f32 %v300
        %vm307 = vmor %vm305, %vm306
        %v308 = vsel %vm307, %v300, %v304
        %v309 = vand.u32 2147483647, %v299
        %vm310 = vcmp.eq.f32.partialorder %v309, 8.507059e+37
        %v311 = vand.u32 %v299, 2147483648
        %v312 = vor.u32 1.1754944e-38, %v311
        %v313 = vsel %vm310, %v312, %v308
        %v314 = vmul.f32 %v296, %v313
        %315 = vst.msk [vmem:[%s218] sm:$0xff] %vm264, %v314
        %316 = vrot.lane.b32.xlu0 %v262, 120
        %v317 = vpop.permute.xlu0 %316
        %318 = vrot.lane.b32.xlu0 %v263, 120
        %v319 = vpop.permute.xlu0 %318
        %v320 = vsel %vm264, %v317, 0
        %v322 = vsel %vm264, %v319, 0
        %324 = vmatpush.xpose.msra.mxu0 0.0
        %325 = vmatpush.xpose.msra.mxu0 0.0
        %326 = vmatpush.xpose.msra.mxu0 0.0
        %327 = vmatpush.xpose.msra.mxu0 0.0
        %328 = vmatpush.xpose.msra.mxu0 0.0
        %329 = vmatpush.xpose.msra.mxu0 0.0
        %330 = vmatpush.xpose.msra.mxu0 0.0
        %331 = vmatpush.xpose.msra.mxu0 0.0
        %332 = vmatpush.xpose.msra.mxu0 0.0
        %333 = vmatpush.xpose.msra.mxu0 0.0
        %334 = vmatpush.xpose.msra.mxu0 0.0
        %335 = vmatpush.xpose.msra.mxu0 0.0
        %336 = vmatpush.xpose.msra.mxu0 0.0
        %337 = vmatpush.xpose.msra.mxu0 0.0
        %338 = vmatpush.xpose.msra.mxu0 0.0
        %339 = vmatpush.xpose.msra.mxu0 %v322
        %340 = vmatmul.f32.gmra.mxu0 %v320
        %v341 = vpop.f32.mrf.mxu0
        %v342 = vadd.f32 0.0, %v341
        %343 = vdwg.mxu0
        %v344 = vsel %vm264, %v342, -inf
        %345 = vmax.xlane.f32.xlu0 %v344
        %v346 = vpop.xlane.xlu0 %345
        %v347 = vsub.f32 %v342, %v346
        %v348 = vmul.f32 %v347, 1.442695
        %v349 = vpow.pop %v348
        %v350 = vsel %vm264, %v349, 0.0
        %351 = vadd.xlane.f32.xlu0 %v350
        %v352 = vpop.xlane.xlu0 %351
        %v353 = vrcp.pop %v352
        %v354 = vmul.f32 %v352, %v353
        %v355 = vsub.f32 1.0, %v354
        %v356 = vmul.f32 %v353, %v355
        %v357 = vadd.f32 %v353, %v356
        %vm358 = vweird.f32 %v352
        %vm359 = vweird.f32 %v353
        %vm360 = vmor %vm358, %vm359
        %v361 = vsel %vm360, %v353, %v357
        %v362 = vand.u32 2147483647, %v352
        %vm363 = vcmp.eq.f32.partialorder %v362, 8.507059e+37
        %v364 = vand.u32 %v352, 2147483648
        %v365 = vor.u32 1.1754944e-38, %v364
        %v366 = vsel %vm363, %v365, %v361
        %v367 = vmul.f32 %v349, %v366
        %s368 = scalar_lea.vmem %s218, 8 [#allocation9]
        %369 = vst.msk [vmem:[%s368] sm:$0xff] %vm264, %v367
        %370 = vrot.lane.b32.xlu0 %v262, 112
        %v371 = vpop.permute.xlu0 %370
        %372 = vrot.lane.b32.xlu0 %v263, 112
        %v373 = vpop.permute.xlu0 %372
        %v374 = vsel %vm264, %v371, 0
        %v376 = vsel %vm264, %v373, 0
        %378 = vmatpush.xpose.msra.mxu0 0.0
        %379 = vmatpush.xpose.msra.mxu0 0.0
        %380 = vmatpush.xpose.msra.mxu0 0.0
        %381 = vmatpush.xpose.msra.mxu0 0.0
        %382 = vmatpush.xpose.msra.mxu0 0.0
        %383 = vmatpush.xpose.msra.mxu0 0.0
        %384 = vmatpush.xpose.msra.mxu0 0.0
        %385 = vmatpush.xpose.msra.mxu0 0.0
        %386 = vmatpush.xpose.msra.mxu0 0.0
        %387 = vmatpush.xpose.msra.mxu0 0.0
        %388 = vmatpush.xpose.msra.mxu0 0.0
        %389 = vmatpush.xpose.msra.mxu0 0.0
        %390 = vmatpush.xpose.msra.mxu0 0.0
        %391 = vmatpush.xpose.msra.mxu0 0.0
        %392 = vmatpush.xpose.msra.mxu0 0.0
        %393 = vmatpush.xpose.msra.mxu0 %v376
        %394 = vmatmul.f32.gmra.mxu0 %v374
        %v395 = vpop.f32.mrf.mxu0
        %v396 = vadd.f32 0.0, %v395
        %397 = vdwg.mxu0
        %v398 = vsel %vm264, %v396, -inf
        %399 = vmax.xlane.f32.xlu0 %v398
        %v400 = vpop.xlane.xlu0 %399
        %v401 = vsub.f32 %v396, %v400
        %v402 = vmul.f32 %v401, 1.442695
        %v403 = vpow.pop %v402
        %v404 = vsel %vm264, %v403, 0.0
        %405 = vadd.xlane.f32.xlu0 %v404
        %v406 = vpop.xlane.xlu0 %405
        %v407 = vrcp.pop %v406
        %v408 = vmul.f32 %v406, %v407
        %v409 = vsub.f32 1.0, %v408
        %v410 = vmul.f32 %v407, %v409
        %v411 = vadd.f32 %v407, %v410
        %vm412 = vweird.f32 %v406
        %vm413 = vweird.f32 %v407
        %vm414 = vmor %vm412, %vm413
        %v415 = vsel %vm414, %v407, %v411
        %v416 = vand.u32 2147483647, %v406
        %vm417 = vcmp.eq.f32.partialorder %v416, 8.507059e+37
        %v418 = vand.u32 %v406, 2147483648
        %v419 = vor.u32 1.1754944e-38, %v418
        %v420 = vsel %vm417, %v419, %v415
        %v421 = vmul.f32 %v403, %v420
        %s422 = scalar_lea.vmem %s218, 16 [#allocation9]
        %423 = vst.msk [vmem:[%s422] sm:$0xff] %vm264, %v421
        %424 = vrot.lane.b32.xlu0 %v262, 104
        %v425 = vpop.permute.xlu0 %424
        %426 = vrot.lane.b32.xlu0 %v263, 104
        %v427 = vpop.permute.xlu0 %426
        %v428 = vsel %vm264, %v425, 0
        %v430 = vsel %vm264, %v427, 0
        %432 = vmatpush.xpose.msra.mxu0 0.0
        %433 = vmatpush.xpose.msra.mxu0 0.0
        %434 = vmatpush.xpose.msra.mxu0 0.0
        %435 = vmatpush.xpose.msra.mxu0 0.0
        %436 = vmatpush.xpose.msra.mxu0 0.0
        %437 = vmatpush.xpose.msra.mxu0 0.0
        %438 = vmatpush.xpose.msra.mxu0 0.0
        %439 = vmatpush.xpose.msra.mxu0 0.0
        %440 = vmatpush.xpose.msra.mxu0 0.0
        %441 = vmatpush.xpose.msra.mxu0 0.0
        %442 = vmatpush.xpose.msra.mxu0 0.0
        %443 = vmatpush.xpose.msra.mxu0 0.0
        %444 = vmatpush.xpose.msra.mxu0 0.0
        %445 = vmatpush.xpose.msra.mxu0 0.0
        %446 = vmatpush.xpose.msra.mxu0 0.0
        %447 = vmatpush.xpose.msra.mxu0 %v430
        %448 = vmatmul.f32.gmra.mxu0 %v428
        %v449 = vpop.f32.mrf.mxu0
        %v450 = vadd.f32 0.0, %v449
        %451 = vdwg.mxu0
        %v452 = vsel %vm264, %v450, -inf
        %453 = vmax.xlane.f32.xlu0 %v452
        %v454 = vpop.xlane.xlu0 %453
        %v455 = vsub.f32 %v450, %v454
        %v456 = vmul.f32 %v455, 1.442695
        %v457 = vpow.pop %v456
        %v458 = vsel %vm264, %v457, 0.0
        %459 = vadd.xlane.f32.xlu0 %v458
        %v460 = vpop.xlane.xlu0 %459
        %v461 = vrcp.pop %v460
        %v462 = vmul.f32 %v460, %v461
        %v463 = vsub.f32 1.0, %v462
        %v464 = vmul.f32 %v461, %v463
        %v465 = vadd.f32 %v461, %v464
        %vm466 = vweird.f32 %v460
        %vm467 = vweird.f32 %v461
        %vm468 = vmor %vm466, %vm467
        %v469 = vsel %vm468, %v461, %v465
        %v470 = vand.u32 2147483647, %v460
        %vm471 = vcmp.eq.f32.partialorder %v470, 8.507059e+37
        %v472 = vand.u32 %v460, 2147483648
        %v473 = vor.u32 1.1754944e-38, %v472
        %v474 = vsel %vm471, %v473, %v469
        %v475 = vmul.f32 %v457, %v474
        %s476 = scalar_lea.vmem %s218, 24 [#allocation9]
        %477 = vst.msk [vmem:[%s476] sm:$0xff] %vm264, %v475
        %s478 = sand.u32 %s111, 1
        %s479 = scalar_lea.sflag [#allocation6], %s478
        %s480 = sand.u32 %s111, 1
        %s481 = smul.addr %s480, 32
        %s482 = scalar_lea.vmem [#allocation9], %s481
        // Predicated region
        $region45: #{tpu_custom_call.1} parent=31 // pred_check
          %p483 = pneg %p121
        $region46: #{tpu_custom_call.1} parent=31 // pred_check_branch
          %485 = sbr.rel (%p483) target = $region48
        $region47: #{tpu_custom_call.1} parent=31 // pred_region
          %487 = vsyncadd %s479, 0
          %s488 = smul.addr %s25, 4
          %s489 = sadd.s32 %s26, %s488
          %s490 = smul.addr %s489, 8
          %s491 = scalar_lea.hbm %s3, %s490
          %s492 = sshll.u32 %s482, 4
          %s493 = int_to_ptr.vmem [resolvable:$true] %s492
          %s494 = sshll.u32 %s491, 4
          %s495 = int_to_ptr.hbm [resolvable:$true] %s494
          %500 = dma.vmem_to_hbm [thread:$0]  %s493, 512, %s495, %s479, 128, 128, 8
        $region48: #{tpu_custom_call.1} parent=31 // pred_fallthru
          _
      $region32: #{tpu_custom_call.1} parent=5 // pred_fallthru
        _
      %p501 = scmp.le.s32.totalorder 2, %s16
      // Predicated region
      $region49: #{tpu_custom_call.1} parent=5 // pred_check
        %p502 = pneg %p501
      $region50: #{tpu_custom_call.1} parent=5 // pred_check_branch
        %504 = sbr.rel (%p502) target = $region52
      $region51: #{tpu_custom_call.1} parent=5 // pred_region
        %s505 = ssub.s32 %s16, 2
        // Predicated region
        $region53: #{tpu_custom_call.1} parent=51 // pred_check
          %p506 = pneg %p127
        $region54: #{tpu_custom_call.1} parent=51 // pred_check_branch
          %508 = sbr.rel (%p506) target = $region56
        $region55: #{tpu_custom_call.1} parent=51 // pred_region
          %s509 = sand.u32 %s112, 1
          %s510 = scalar_lea.sflag [#allocation6], %s509
          %s511 = sand.u32 %s112, 1
          %s512 = smul.addr %s511, 32
          %s513 = scalar_lea.vmem [#allocation9], %s512
          %515 = dma.done %s510, 512
        $region56: #{tpu_custom_call.1} parent=51 // pred_fallthru
          _
      $region52: #{tpu_custom_call.1} parent=5 // pred_fallthru
        _
    $region6: #{tpu_custom_call.1} parent=1 // loop_footer
      %s20 = sadd.s32 1, %s16
    $region7: #{tpu_custom_call.1} parent=1 // loop_footer_branch
      %15 = sbr.rel target = $region3
    $region8: #{tpu_custom_call.1} parent=1 // loop_exit
      _
    %516 = vsyncpa [#allocation5], 1
    %s517 = scalar_lea.sflag [#allocation5], 1
    %518 = vsyncpa %s517, 1
    %519 = vsyncpa [#allocation8], 1
    %520 = vsyncpa [#allocation6], 1
    %s521 = scalar_lea.sflag [#allocation6], 1
    %522 = vsyncpa %s521, 1

</llo_original>
